<compile_context>
chip_gen: v7x
topology: tpu7x:2x2x1
jax: 0.10.0
libtpu: 0.0.40
codegen_flags: <defaults>
</compile_context>

<pallas_src>
import functools

import jax
import jax.numpy as jnp
from jax.experimental import pallas as pl
from jax.experimental.pallas import tpu as pltpu

BN_EPS = 1e-5        # nn.BatchNorm2d default eps (eval mode)
LANES = 128          # TPU vreg lane width
MAX_SINGLE_K = 2048  # whole-K-in-one-tile threshold (bf16 tiles stay ~2 MiB)


# --------------------------------- helpers -----------------------------------

def _round_up(x, m):
    return (x + m - 1) // m * m


def _elu(y):
    # ELU(alpha=1).  The exp argument is clamped to <= 0 so the (discarded) positive
    # branch cannot overflow; exp(y)-1 vs expm1 precision loss is negligible at the
    # bf16 output precision used here.
    return jnp.where(y > 0.0, y, jnp.exp(jnp.minimum(y, 0.0)) - 1.0)


def _pick_tm(m):
    """Row tile: multiple of 16 (bf16 sublane pack), <= 512, and chosen so the parallel
    M grid has >= 2 steps when M allows (both v7x TensorCores get work)."""
    if m <= 16:
        return 16
    if m >= 1024:
        return 512
    return min(512, _round_up((m + 1) // 2, 16))


def _pick_tk(kp):
    """K tile: whole K when it fits one tile, else the largest 128-multiple divisor."""
    if kp <= MAX_SINGLE_K:
        return kp
    for cand in (2048, 1536, 1024, 512, 256, 128):
        if kp % cand == 0:
            return cand
    return 128


# ------------------------ fused matmul kernels (K = 1 tile) ------------------

def _mm_bn_kernel(a_ref, b_ref, scale_ref, shift_ref, o_ref, *, act):
    """o = [ELU](A @ B * scale + shift).  Single K tile: no accumulator scratch."""
    y = jnp.dot(a_ref[...], b_ref[...], preferred_element_type=jnp.float32)
    y = y * scale_ref[...] + shift_ref[...]
    if act:
        y = _elu(y)
    o_ref[...] = y.astype(o_ref.dtype)


def _mm_bn_res_kernel(a_ref, b_ref, scale_ref, shift_ref, r_ref, o_ref, *, act):
    """o = [ELU](A @ B * scale + shift + residual).  Single K tile."""
    y = jnp.dot(a_ref[...], b_ref[...], preferred_element_type=jnp.float32)
    y = y * scale_ref[...] + shift_ref[...] + r_ref[...].astype(jnp.float32)
    if act:
        y = _elu(y)
    o_ref[...] = y.astype(o_ref.dtype)


def _mm_bn_dual_kernel(a_ref, b1_ref, s1_ref, t1_ref, b2_ref, s2_ref, t2_ref,
                       o1_ref, o2_ref, *, act):
    """Two outputs from the same A operand (conv1 + fused 1x1 projection shortcut):
       o1 = [ELU](A @ B1 * s1 + t1),   o2 = A @ B2 * s2 + t2   (no activation)."""
    av = a_ref[...]
    y1 = jnp.dot(av, b1_ref[...], preferred_element_type=jnp.float32)
    y1 = y1 * s1_ref[...] + t1_ref[...]
    if act:
        y1 = _elu(y1)
    o1_ref[...] = y1.astype(o1_ref.dtype)
    y2 = jnp.dot(av, b2_ref[...], preferred_element_type=jnp.float32)
    o2_ref[...] = (y2 * s2_ref[...] + t2_ref[...]).astype(o2_ref.dtype)


# ----------------------- fused matmul kernels (K grid) -----------------------

def _mm_bn_kernel_kgrid(a_ref, b_ref, scale_ref, shift_ref, o_ref, acc_ref, *, act):
    contrib = jnp.dot(a_ref[...], b_ref[...], preferred_element_type=jnp.float32)
    kk = pl.program_id(2)

    @pl.when(kk == 0)
    def _():
        acc_ref[...] = contrib          # direct assign: no zeros-init round trip

    @pl.when(kk != 0)
    def _():
        acc_ref[...] += contrib

    @pl.when(kk == pl.num_programs(2) - 1)
    def _():
        y = acc_ref[...] * scale_ref[...] + shift_ref[...]
        if act:
            y = _elu(y)
        o_ref[...] = y.astype(o_ref.dtype)


def _mm_bn_res_kernel_kgrid(a_ref, b_ref, scale_ref, shift_ref, r_ref, o_ref,
                            acc_ref, *, act):
    contrib = jnp.dot(a_ref[...], b_ref[...], preferred_element_type=jnp.float32)
    kk = pl.program_id(2)

    @pl.when(kk == 0)
    def _():
        acc_ref[...] = contrib

    @pl.when(kk != 0)
    def _():
        acc_ref[...] += contrib

    @pl.when(kk == pl.num_programs(2) - 1)
    def _():
        y = (acc_ref[...] * scale_ref[...] + shift_ref[...]
             + r_ref[...].astype(jnp.float32))
        if act:
            y = _elu(y)
        o_ref[...] = y.astype(o_ref.dtype)


# ------------------------------ tiled wrapper --------------------------------

def fused_matmul(a, b, scale, shift, resid=None, second=None, act=False,
                 out_dtype=jnp.bfloat16):
    """Tiled MXU matmul with fused BN / optional residual / optional ELU epilogue.

    a: (M, K), b: (K, N), scale/shift: (1, N) f32, resid: optional (M, N).
    second: optional (b2, scale2, shift2) -> additional output A@b2*scale2+shift2
    (the fused projection shortcut; no activation).  Returns out or (out, out_sc).
    bf16 operands, f32 accumulation + epilogue.
    """
    m, k = a.shape
    n = b.shape[1]

    tm = _pick_tm(m)
    mp = _round_up(m, tm)
    kp = _round_up(k, LANES)
    tk = _pick_tk(kp)
    nk = kp // tk
    tn = 256 if n >= 256 else LANES
    np_ = _round_up(n, tn)

    if second is not None and nk > 1:
        # Large-K fallback: run the projection shortcut as its own kernel.
        b2, s2, t2 = second
        main = fused_matmul(a, b, scale, shift, resid=resid, act=act, out_dtype=out_dtype)
        sc = fused_matmul(a, b2, s2, t2, act=False, out_dtype=out_dtype)
        return main, sc

    a = a.astype(jnp.bfloat16)
    b = b.astype(jnp.bfloat16)
    if (mp, kp) != (m, k):
        a = jnp.pad(a, ((0, mp - m), (0, kp - k)))
    if (kp, np_) != (k, n):
        b = jnp.pad(b, ((0, kp - k), (0, np_ - n)))

    def _pad_n(v):
        v = v.astype(jnp.float32).reshape(1, -1)
        return jnp.pad(v, ((0, 0), (0, np_ - n))) if np_ != n else v

    scale, shift = _pad_n(scale), _pad_n(shift)

    if nk == 1:
        grid = (mp // tm, np_ // tn)
        a_spec = pl.BlockSpec((tm, kp), lambda i, j: (i, 0))
        b_spec = pl.BlockSpec((kp, tn), lambda i, j: (0, j))
        n_spec = pl.BlockSpec((1, tn), lambda i, j: (0, j))
        mn_spec = pl.BlockSpec((tm, tn), lambda i, j: (i, j))
        semantics = ("parallel", "parallel")
        scratch = []
    else:
        grid = (mp // tm, np_ // tn, nk)
        a_spec = pl.BlockSpec((tm, tk), lambda i, j, kk: (i, kk))
        b_spec = pl.BlockSpec((tk, tn), lambda i, j, kk: (kk, j))
        n_spec = pl.BlockSpec((1, tn), lambda i, j, kk: (0, j))
        mn_spec = pl.BlockSpec((tm, tn), lambda i, j, kk: (i, j))
        semantics = ("parallel", "parallel", "arbitrary")
        scratch = [pltpu.VMEM((tm, tn), jnp.float32)]

    in_specs = [a_spec, b_spec, n_spec, n_spec]
    operands = [a, b, scale, shift]
    out_shape = jax.ShapeDtypeStruct((mp, np_), out_dtype)
    out_specs = mn_spec

    if second is not None:
        b2, s2, t2 = second
        b2 = b2.astype(jnp.bfloat16)
        if (kp, np_) != b2.shape:
            b2 = jnp.pad(b2, ((0, kp - b2.shape[0]), (0, np_ - b2.shape[1])))
        in_specs += [b_spec, n_spec, n_spec]
        operands += [b2, _pad_n(s2), _pad_n(t2)]
        kernel = functools.partial(_mm_bn_dual_kernel, act=act)
        out_shape = (out_shape, jax.ShapeDtypeStruct((mp, np_), out_dtype))
        out_specs = [mn_spec, mn_spec]
    elif resid is not None:
        r = resid.astype(jnp.bfloat16)
        if (mp, np_) != r.shape:
            r = jnp.pad(r, ((0, mp - r.shape[0]), (0, np_ - r.shape[1])))
        in_specs.append(mn_spec)
        operands.append(r)
        kernel = functools.partial(
            _mm_bn_res_kernel if nk == 1 else _mm_bn_res_kernel_kgrid, act=act)
    else:
        kernel = functools.partial(
            _mm_bn_kernel if nk == 1 else _mm_bn_kernel_kgrid, act=act)

    out = pl.pallas_call(
        kernel,
        out_shape=out_shape,
        grid_spec=pltpu.PrefetchScalarGridSpec(
            num_scalar_prefetch=0,
            grid=grid,
            in_specs=in_specs,
            out_specs=out_specs,
            scratch_shapes=scratch,
        ),
        compiler_params=pltpu.CompilerParams(dimension_semantics=semantics),
    )(*operands)

    if second is not None:
        o1, o2 = out
        return o1[:m, :n], o2[:m, :n]
    return out[:m, :n]


# ----------------------------- conv glue (jitted) ----------------------------

def _im2col_3x3(x, stride):
    """x: (N, H, W, C) with UNPADDED channels.  Returns (N*Hout*Wout, round_up(9*C,128))
    bf16 patches: K is the flattened (tap, channel) axis, zero-padded ONCE at the end."""
    nb, h, w, c = x.shape
    hout = (h + 2 - 3) // stride + 1
    wout = (w + 2 - 3) // stride + 1
    xp = jnp.pad(x, ((0, 0), (1, 1), (1, 1), (0, 0)))
    taps = [xp[:, i:i + stride * hout:stride, j:j + stride * wout:stride, :]
            for i in range(3) for j in range(3)]
    patches = jnp.concatenate(taps, axis=-1).reshape(nb * hout * wout, 9 * c)
    kp = _round_up(9 * c, LANES)
    if kp != 9 * c:
        patches = jnp.pad(patches, ((0, 0), (0, kp - 9 * c)))
    return patches.astype(jnp.bfloat16), hout, wout


def conv3x3_bn_act(x, wmat, scale, shift, stride, residual=None, act=True,
                   wsc=None, ssc=None, bsc=None):
    """3x3 conv (pad=1, no bias) + BN [+ residual] [+ ELU] in one kernel call.
    If wsc is given, the fused 1x1(stride) projection shortcut (conv+BN) is emitted as a
    second output of the SAME kernel (its weights live at the centre-tap rows of K)."""
    nb, h, w, c = x.shape
    cout = wmat.shape[1]
    patches, hout, wout = _im2col_3x3(x, stride)
    r2d = None if residual is None else residual.reshape(nb * hout * wout, cout)
    second = None if wsc is None else (wsc, ssc, bsc)
    out = fused_matmul(patches, wmat, scale, shift, resid=r2d, second=second, act=act)
    if wsc is None:
        return out.reshape(nb, hout, wout, cout)
    o1, o2 = out
    return o1.reshape(nb, hout, wout, cout), o2.reshape(nb, hout, wout, cout)


# ------------------------- parameter packing (one-time) ----------------------

def _prep_conv3x3_w(w_oihw, cout_pad):
    """(O, I, 3, 3) -> (round_up(9*I, 128), cout_pad) bf16 matmul weights.
    K rows are the flattened (tap, in_channel) index -- padded once, not per tap."""
    cout, cin, kh, kw = w_oihw.shape
    wm = jnp.transpose(w_oihw, (2, 3, 1, 0)).reshape(kh * kw * cin, cout)
    kp = _round_up(kh * kw * cin, LANES)
    wm = jnp.pad(wm, ((0, kp - kh * kw * cin), (0, cout_pad - cout)))
    return wm.astype(jnp.bfloat16)


def _prep_shortcut_w(w_oihw, cin, kp, cout_pad):
    """1x1 projection weights embedded at the centre-tap rows of conv1's K axis, so the
    shortcut (= x[::s, ::s] @ W) reuses conv1's im2col A operand."""
    cout = w_oihw.shape[0]
    w = w_oihw[:, :, 0, 0].T                                   # (I, O)
    wm = jnp.zeros((kp, cout_pad), jnp.float32)
    wm = wm.at[4 * cin:5 * cin, :cout].set(w)                  # centre tap = index 4
    return wm.astype(jnp.bfloat16)


def _prep_bn(gamma, beta, mean, var, cout_pad):
    """Fold eval-mode BN into (scale, shift); zero-pad to cout_pad channels."""
    scale = gamma / jnp.sqrt(var + BN_EPS)
    shift = beta - mean * scale
    c = gamma.shape[0]
    scale = jnp.pad(scale, (0, cout_pad - c)).reshape(1, cout_pad).astype(jnp.float32)
    shift = jnp.pad(shift, (0, cout_pad - c)).reshape(1, cout_pad).astype(jnp.float32)
    return scale, shift


def prep_basic_block(raw):
    """Pack PyTorch-layout BasicBlock params into kernel-ready matrices (done once)."""
    cout = raw["conv1_w"].shape[0]
    cin = raw["conv1_w"].shape[1]
    cout_pad = _round_up(cout, LANES)
    p = {"w1": _prep_conv3x3_w(raw["conv1_w"], cout_pad),
         "w2": _prep_conv3x3_w(raw["conv2_w"], cout_pad)}
    p["s1"], p["b1"] = _prep_bn(raw["bn1_gamma"], raw["bn1_beta"],
                                raw["bn1_mean"], raw["bn1_var"], cout_pad)
    p["s2"], p["b2"] = _prep_bn(raw["bn2_gamma"], raw["bn2_beta"],
                                raw["bn2_mean"], raw["bn2_var"], cout_pad)
    if "sc_w" in raw:
        p["wsc"] = _prep_shortcut_w(raw["sc_w"], cin, p["w1"].shape[0], cout_pad)
        p["ssc"], p["bsc"] = _prep_bn(raw["bnsc_gamma"], raw["bnsc_beta"],
                                      raw["bnsc_mean"], raw["bnsc_var"], cout_pad)
    return p


# ------------------------------ BasicBlock.forward ---------------------------

@functools.partial(jax.jit, static_argnums=(2, 3))
def basic_block_forward(x_nchw, p, stride, planes):
    """out = elu(bn2(conv2(elu(bn1(conv1(x))))) + shortcut(x)).  NCHW f32 in/out."""
    nb, cin, h, w = x_nchw.shape
    cp = p["w1"].shape[1]                                       # channel pad (128)
    x = jnp.transpose(x_nchw, (0, 2, 3, 1)).astype(jnp.bfloat16)   # NHWC, UNPADDED C

    if "wsc" in p:
        # Kernel #1: elu(bn1(conv1(x))) AND the 1x1(stride)+BN projection shortcut,
        # both from conv1's im2col patches (two outputs, one launch).
        out, sc = conv3x3_bn_act(x, p["w1"], p["s1"], p["b1"], stride, act=True,
                                 wsc=p["wsc"], ssc=p["ssc"], bsc=p["bsc"])
    else:
        out = conv3x3_bn_act(x, p["w1"], p["s1"], p["b1"], stride, act=True)
        # Identity shortcut: channel-pad x so it matches the conv2 output block.
        sc = jnp.pad(x, ((0, 0), (0, 0), (0, 0), (0, cp - cin)))

    # Kernel #2: elu(bn2(conv2(out)) + shortcut); im2col reads only the first `planes`
    # channels of the (lane-dense, 128-wide) intermediate activation.
    out = conv3x3_bn_act(out[..., :planes], p["w2"], p["s2"], p["b2"], 1,
                         residual=sc, act=True)

    out = out[..., :planes]
    # Module boundary: back to PyTorch NCHW/f32.  When chaining blocks, keep activations
    # NHWC bf16 instead (this transpose/cast is an extra HBM pass).
    return jnp.transpose(out, (0, 3, 1, 2)).astype(jnp.float32)


# ------------------------------ pure-JAX reference ---------------------------

def _bf16(t):
    return t.astype(jnp.bfloat16).astype(jnp.float32)


def _ref_conv(x, w, stride, pad):
    return jax.lax.conv_general_dilated(
        x, w, (stride, stride), [(pad, pad), (pad, pad)],
        dimension_numbers=("NCHW", "OIHW", "NCHW"),
        precision=jax.lax.Precision.HIGHEST)


def _ref_bn(y, gamma, beta, mean, var):
    scale = gamma / jnp.sqrt(var + BN_EPS)
    shift = beta - mean * scale
    return y * scale[None, :, None, None] + shift[None, :, None, None]


def _ref_elu(y):
    return jnp.where(y > 0, y, jnp.exp(y) - 1.0)


def ref_basic_block(x, raw, stride):
    """Reference quantized at the same points as the kernel pipeline (bf16 conv operands /
    bf16 activation storage, f32 accumulation and epilogue).  Note: like the kernel, the
    residual is stored in bf16 before the add (deliberate deviation from pure f32)."""
    xq = _bf16(x)
    h = _ref_elu(_ref_bn(_ref_conv(xq, _bf16(raw["conv1_w"]), stride, 1),
                         raw["bn1_gamma"], raw["bn1_beta"],
                         raw["bn1_mean"], raw["bn1_var"]))
    h = _bf16(h)
    if "sc_w" in raw:
        sc = _bf16(_ref_bn(_ref_conv(xq, _bf16(raw["sc_w"]), stride, 0),
                           raw["bnsc_gamma"], raw["bnsc_beta"],
                           raw["bnsc_mean"], raw["bnsc_var"]))
    else:
        sc = xq
    out = _ref_elu(_ref_bn(_ref_conv(h, _bf16(raw["conv2_w"]), 1, 1),
                           raw["bn2_gamma"], raw["bn2_beta"],
                           raw["bn2_mean"], raw["bn2_var"]) + sc)
    return _bf16(out)


# ------------------------------ parameter init -------------------------------

def init_raw_basic_block(key, in_planes, planes, stride):
    ks = iter(jax.random.split(key, 20))

    def bn_params(prefix, c):
        return {
            prefix + "_gamma": jax.random.uniform(next(ks), (c,), jnp.float32, 0.5, 1.5),
            prefix + "_beta": 0.1 * jax.random.normal(next(ks), (c,), jnp.float32),
            prefix + "_mean": 0.1 * jax.random.normal(next(ks), (c,), jnp.float32),
            prefix + "_var": jax.random.uniform(next(ks), (c,), jnp.float32, 0.5, 1.5),
        }

    raw = {
        "conv1_w": jax.random.normal(next(ks), (planes, in_planes, 3, 3), jnp.float32)
                   * (2.0 / (9 * in_planes)) ** 0.5,
        "conv2_w": jax.random.normal(next(ks), (planes, planes, 3, 3), jnp.float32)
                   * (2.0 / (9 * planes)) ** 0.5,
    }
    raw.update(bn_params("bn1", planes))
    raw.update(bn_params("bn2", planes))
    if stride != 1 or in_planes != planes:
        raw["sc_w"] = (jax.random.normal(next(ks), (planes, in_planes, 1, 1), jnp.float32)
                       * (2.0 / in_planes) ** 0.5)
        raw.update(bn_params("bnsc", planes))
    return raw


# ------------------------------------ main ------------------------------------

if __name__ == "__main__":
    key = jax.random.PRNGKey(0)
    kx, k1, k2 = jax.random.split(key, 3)

    x = jax.random.normal(kx, (2, 4, 16, 16), jnp.float32)     # NCHW, like PyTorch

    # Case 1: BasicBlock(in_planes=4, planes=8, stride=2) -> projection shortcut (fused).
    raw1 = init_raw_basic_block(k1, 4, 8, 2)
    p1 = prep_basic_block(raw1)
    y1 = jax.block_until_ready(basic_block_forward(x, p1, 2, 8))
    r1 = jax.block_until_ready(ref_basic_block(x, raw1, 2))
    assert y1.shape == (2, 8, 8, 8), y1.shape
    assert jnp.allclose(y1, r1, atol=2e-2, rtol=2e-2), float(jnp.max(jnp.abs(y1 - r1)))

    # Case 2: BasicBlock(in_planes=4, planes=4, stride=1) -> identity shortcut.
    raw2 = init_raw_basic_block(k2, 4, 4, 1)
    p2 = prep_basic_block(raw2)
    y2 = jax.block_until_ready(basic_block_forward(x, p2, 1, 4))
    r2 = jax.block_until_ready(ref_basic_block(x, raw2, 1))
    assert y2.shape == (2, 4, 16, 16), y2.shape
    assert jnp.allclose(y2, r2, atol=2e-2, rtol=2e-2), float(jnp.max(jnp.abs(y2 - r2)))

    print("KERNEL_OK")
</pallas_src>

<mosaic_0001>
module attributes {stable_mosaic.version = 11 : i64} {
  func.func @_mm_bn_dual_kernel(%arg0: i32, %arg1: i32, %arg2: memref<64x128xbf16, #tpu.memory_space<vmem>>, %arg3: memref<128x128xbf16, #tpu.memory_space<vmem>>, %arg4: memref<1x128xf32, #tpu.memory_space<vmem>>, %arg5: memref<1x128xf32, #tpu.memory_space<vmem>>, %arg6: memref<128x128xbf16, #tpu.memory_space<vmem>>, %arg7: memref<1x128xf32, #tpu.memory_space<vmem>>, %arg8: memref<1x128xf32, #tpu.memory_space<vmem>>, %arg9: memref<64x128xbf16, #tpu.memory_space<vmem>>, %arg10: memref<64x128xbf16, #tpu.memory_space<vmem>>) attributes {dimension_semantics = [#tpu.dimension_semantics<parallel>, #tpu.dimension_semantics<parallel>], iteration_bounds = array<i64: 2, 1>, scalar_prefetch = 0 : i64, scratch_operands = 0 : i64, tpu.core_type = #tpu.core_type<tc>, window_params = [{transform_indices = @transform_0, window_bounds = array<i64: 64, 128>}, {transform_indices = @transform_1, window_bounds = array<i64: 128, 128>}, {transform_indices = @transform_2, window_bounds = array<i64: 1, 128>}, {transform_indices = @transform_3, window_bounds = array<i64: 1, 128>}, {transform_indices = @transform_4, window_bounds = array<i64: 128, 128>}, {transform_indices = @transform_5, window_bounds = array<i64: 1, 128>}, {transform_indices = @transform_6, window_bounds = array<i64: 1, 128>}, {transform_indices = @transform_7, window_bounds = array<i64: 64, 128>}, {transform_indices = @transform_8, window_bounds = array<i64: 64, 128>}]} {
    %c0 = arith.constant 0 : index
    %c0_0 = arith.constant 0 : index
    %0 = vector.load %arg2[%c0, %c0_0] : memref<64x128xbf16, #tpu.memory_space<vmem>>, vector<64x128xbf16>
    %c0_1 = arith.constant 0 : index
    %c0_2 = arith.constant 0 : index
    %1 = vector.load %arg3[%c0_1, %c0_2] : memref<128x128xbf16, #tpu.memory_space<vmem>>, vector<128x128xbf16>
    %cst = arith.constant dense<0.000000e+00> : vector<64x128xf32>
    %2 = tpu.matmul %0, %1, %cst {dimension_numbers = #tpu.dot_dimension_numbers<[1], [0], [0], [1], [0, 0, 1, 1], [], []>} : vector<64x128xbf16>, vector<128x128xbf16>, vector<64x128xf32> -> vector<64x128xf32>
    %c0_3 = arith.constant 0 : index
    %c0_4 = arith.constant 0 : index
    %3 = vector.load %arg4[%c0_3, %c0_4] : memref<1x128xf32, #tpu.memory_space<vmem>>, vector<1x128xf32>
    %4 = vector.broadcast %3 : vector<1x128xf32> to vector<64x128xf32>
    %5 = arith.mulf %2, %4 : vector<64x128xf32>
    %c0_5 = arith.constant 0 : index
    %c0_6 = arith.constant 0 : index
    %6 = vector.load %arg5[%c0_5, %c0_6] : memref<1x128xf32, #tpu.memory_space<vmem>>, vector<1x128xf32>
    %7 = vector.broadcast %6 : vector<1x128xf32> to vector<64x128xf32>
    %8 = arith.addf %5, %7 : vector<64x128xf32>
    %cst_7 = arith.constant 0.000000e+00 : f32
    %9 = vector.broadcast %cst_7 : f32 to vector<64x128xf32>
    %10 = arith.cmpf ogt, %8, %9 : vector<64x128xf32>
    %cst_8 = arith.constant 0.000000e+00 : f32
    %11 = vector.broadcast %cst_8 : f32 to vector<64x128xf32>
    %12 = arith.minimumf %8, %11 : vector<64x128xf32>
    %13 = math.exp %12 : vector<64x128xf32>
    %cst_9 = arith.constant 1.000000e+00 : f32
    %14 = vector.broadcast %cst_9 : f32 to vector<64x128xf32>
    %15 = arith.subf %13, %14 : vector<64x128xf32>
    %16 = arith.select %10, %8, %15 : vector<64x128xi1>, vector<64x128xf32>
    %17 = arith.truncf %16 : vector<64x128xf32> to vector<64x128xbf16>
    %c0_10 = arith.constant 0 : index
    %c0_11 = arith.constant 0 : index
    %18 = vector.load %arg9[%c0_10, %c0_11] : memref<64x128xbf16, #tpu.memory_space<vmem>>, vector<64x128xbf16>
    tpu.vector_store %arg9[%c0_10, %c0_11], %17 {strides = array<i32>} : memref<64x128xbf16, #tpu.memory_space<vmem>>, vector<64x128xbf16>,
    %c0_12 = arith.constant 0 : index
    %c0_13 = arith.constant 0 : index
    %19 = vector.load %arg6[%c0_12, %c0_13] : memref<128x128xbf16, #tpu.memory_space<vmem>>, vector<128x128xbf16>
    %cst_14 = arith.constant dense<0.000000e+00> : vector<64x128xf32>
    %20 = tpu.matmul %0, %19, %cst_14 {dimension_numbers = #tpu.dot_dimension_numbers<[1], [0], [0], [1], [0, 0, 1, 1], [], []>} : vector<64x128xbf16>, vector<128x128xbf16>, vector<64x128xf32> -> vector<64x128xf32>
    %c0_15 = arith.constant 0 : index
    %c0_16 = arith.constant 0 : index
    %21 = vector.load %arg7[%c0_15, %c0_16] : memref<1x128xf32, #tpu.memory_space<vmem>>, vector<1x128xf32>
    %22 = vector.broadcast %21 : vector<1x128xf32> to vector<64x128xf32>
    %23 = arith.mulf %20, %22 : vector<64x128xf32>
    %c0_17 = arith.constant 0 : index
    %c0_18 = arith.constant 0 : index
    %24 = vector.load %arg8[%c0_17, %c0_18] : memref<1x128xf32, #tpu.memory_space<vmem>>, vector<1x128xf32>
    %25 = vector.broadcast %24 : vector<1x128xf32> to vector<64x128xf32>
    %26 = arith.addf %23, %25 : vector<64x128xf32>
    %27 = arith.truncf %26 : vector<64x128xf32> to vector<64x128xbf16>
    %c0_19 = arith.constant 0 : index
    %c0_20 = arith.constant 0 : index
    %28 = vector.load %arg10[%c0_19, %c0_20] : memref<64x128xbf16, #tpu.memory_space<vmem>>, vector<64x128xbf16>
    tpu.vector_store %arg10[%c0_19, %c0_20], %27 {strides = array<i32>} : memref<64x128xbf16, #tpu.memory_space<vmem>>, vector<64x128xbf16>,
    return
  }
  func.func @transform_0(%arg0: i32, %arg1: i32) -> (i32, i32) {
    %c0_i32 = arith.constant 0 : i32
    %c0_i32_0 = arith.constant 0 : i32
    return %arg0, %c0_i32 : i32, i32
  }
  func.func @transform_1(%arg0: i32, %arg1: i32) -> (i32, i32) {
    %c0_i32 = arith.constant 0 : i32
    %c0_i32_0 = arith.constant 0 : i32
    return %c0_i32, %arg1 : i32, i32
  }
  func.func @transform_2(%arg0: i32, %arg1: i32) -> (i32, i32) {
    %c0_i32 = arith.constant 0 : i32
    %c0_i32_0 = arith.constant 0 : i32
    return %c0_i32, %arg1 : i32, i32
  }
  func.func @transform_3(%arg0: i32, %arg1: i32) -> (i32, i32) {
    %c0_i32 = arith.constant 0 : i32
    %c0_i32_0 = arith.constant 0 : i32
    return %c0_i32, %arg1 : i32, i32
  }
  func.func @transform_4(%arg0: i32, %arg1: i32) -> (i32, i32) {
    %c0_i32 = arith.constant 0 : i32
    %c0_i32_0 = arith.constant 0 : i32
    return %c0_i32, %arg1 : i32, i32
  }
  func.func @transform_5(%arg0: i32, %arg1: i32) -> (i32, i32) {
    %c0_i32 = arith.constant 0 : i32
    %c0_i32_0 = arith.constant 0 : i32
    return %c0_i32, %arg1 : i32, i32
  }
  func.func @transform_6(%arg0: i32, %arg1: i32) -> (i32, i32) {
    %c0_i32 = arith.constant 0 : i32
    %c0_i32_0 = arith.constant 0 : i32
    return %c0_i32, %arg1 : i32, i32
  }
  func.func @transform_7(%arg0: i32, %arg1: i32) -> (i32, i32) {
    %c0_i32 = arith.constant 0 : i32
    return %arg0, %arg1 : i32, i32
  }
  func.func @transform_8(%arg0: i32, %arg1: i32) -> (i32, i32) {
    %c0_i32 = arith.constant 0 : i32
    return %arg0, %arg1 : i32, i32
  }
}

module attributes {stable_mosaic.version = 11 : i64} {
  func.func @_mm_bn_res_kernel(%arg0: i32, %arg1: i32, %arg2: memref<64x128xbf16, #tpu.memory_space<vmem>>, %arg3: memref<128x128xbf16, #tpu.memory_space<vmem>>, %arg4: memref<1x128xf32, #tpu.memory_space<vmem>>, %arg5: memref<1x128xf32, #tpu.memory_space<vmem>>, %arg6: memref<64x128xbf16, #tpu.memory_space<vmem>>, %arg7: memref<64x128xbf16, #tpu.memory_space<vmem>>) attributes {dimension_semantics = [#tpu.dimension_semantics<parallel>, #tpu.dimension_semantics<parallel>], iteration_bounds = array<i64: 2, 1>, scalar_prefetch = 0 : i64, scratch_operands = 0 : i64, tpu.core_type = #tpu.core_type<tc>, window_params = [{transform_indices = @transform_0, window_bounds = array<i64: 64, 128>}, {transform_indices = @transform_1, window_bounds = array<i64: 128, 128>}, {transform_indices = @transform_2, window_bounds = array<i64: 1, 128>}, {transform_indices = @transform_3, window_bounds = array<i64: 1, 128>}, {transform_indices = @transform_4, window_bounds = array<i64: 64, 128>}, {transform_indices = @transform_5, window_bounds = array<i64: 64, 128>}]} {
    %c0 = arith.constant 0 : index
    %c0_0 = arith.constant 0 : index
    %0 = vector.load %arg2[%c0, %c0_0] : memref<64x128xbf16, #tpu.memory_space<vmem>>, vector<64x128xbf16>
    %c0_1 = arith.constant 0 : index
    %c0_2 = arith.constant 0 : index
    %1 = vector.load %arg3[%c0_1, %c0_2] : memref<128x128xbf16, #tpu.memory_space<vmem>>, vector<128x128xbf16>
    %cst = arith.constant dense<0.000000e+00> : vector<64x128xf32>
    %2 = tpu.matmul %0, %1, %cst {dimension_numbers = #tpu.dot_dimension_numbers<[1], [0], [0], [1], [0, 0, 1, 1], [], []>} : vector<64x128xbf16>, vector<128x128xbf16>, vector<64x128xf32> -> vector<64x128xf32>
    %c0_3 = arith.constant 0 : index
    %c0_4 = arith.constant 0 : index
    %3 = vector.load %arg4[%c0_3, %c0_4] : memref<1x128xf32, #tpu.memory_space<vmem>>, vector<1x128xf32>
    %4 = vector.broadcast %3 : vector<1x128xf32> to vector<64x128xf32>
    %5 = arith.mulf %2, %4 : vector<64x128xf32>
    %c0_5 = arith.constant 0 : index
    %c0_6 = arith.constant 0 : index
    %6 = vector.load %arg5[%c0_5, %c0_6] : memref<1x128xf32, #tpu.memory_space<vmem>>, vector<1x128xf32>
    %7 = vector.broadcast %6 : vector<1x128xf32> to vector<64x128xf32>
    %8 = arith.addf %5, %7 : vector<64x128xf32>
    %c0_7 = arith.constant 0 : index
    %c0_8 = arith.constant 0 : index
    %9 = vector.load %arg6[%c0_7, %c0_8] : memref<64x128xbf16, #tpu.memory_space<vmem>>, vector<64x128xbf16>
    %10 = arith.extf %9 : vector<64x128xbf16> to vector<64x128xf32>
    %11 = arith.addf %8, %10 : vector<64x128xf32>
    %cst_9 = arith.constant 0.000000e+00 : f32
    %12 = vector.broadcast %cst_9 : f32 to vector<64x128xf32>
    %13 = arith.cmpf ogt, %11, %12 : vector<64x128xf32>
    %cst_10 = arith.constant 0.000000e+00 : f32
    %14 = vector.broadcast %cst_10 : f32 to vector<64x128xf32>
    %15 = arith.minimumf %11, %14 : vector<64x128xf32>
    %16 = math.exp %15 : vector<64x128xf32>
    %cst_11 = arith.constant 1.000000e+00 : f32
    %17 = vector.broadcast %cst_11 : f32 to vector<64x128xf32>
    %18 = arith.subf %16, %17 : vector<64x128xf32>
    %19 = arith.select %13, %11, %18 : vector<64x128xi1>, vector<64x128xf32>
    %20 = arith.truncf %19 : vector<64x128xf32> to vector<64x128xbf16>
    %c0_12 = arith.constant 0 : index
    %c0_13 = arith.constant 0 : index
    %21 = vector.load %arg7[%c0_12, %c0_13] : memref<64x128xbf16, #tpu.memory_space<vmem>>, vector<64x128xbf16>
    tpu.vector_store %arg7[%c0_12, %c0_13], %20 {strides = array<i32>} : memref<64x128xbf16, #tpu.memory_space<vmem>>, vector<64x128xbf16>,
    return
  }
  func.func @transform_0(%arg0: i32, %arg1: i32) -> (i32, i32) {
    %c0_i32 = arith.constant 0 : i32
    %c0_i32_0 = arith.constant 0 : i32
    return %arg0, %c0_i32 : i32, i32
  }
  func.func @transform_1(%arg0: i32, %arg1: i32) -> (i32, i32) {
    %c0_i32 = arith.constant 0 : i32
    %c0_i32_0 = arith.constant 0 : i32
    return %c0_i32, %arg1 : i32, i32
  }
  func.func @transform_2(%arg0: i32, %arg1: i32) -> (i32, i32) {
    %c0_i32 = arith.constant 0 : i32
    %c0_i32_0 = arith.constant 0 : i32
    return %c0_i32, %arg1 : i32, i32
  }
  func.func @transform_3(%arg0: i32, %arg1: i32) -> (i32, i32) {
    %c0_i32 = arith.constant 0 : i32
    %c0_i32_0 = arith.constant 0 : i32
    return %c0_i32, %arg1 : i32, i32
  }
  func.func @transform_4(%arg0: i32, %arg1: i32) -> (i32, i32) {
    %c0_i32 = arith.constant 0 : i32
    return %arg0, %arg1 : i32, i32
  }
  func.func @transform_5(%arg0: i32, %arg1: i32) -> (i32, i32) {
    %c0_i32 = arith.constant 0 : i32
    return %arg0, %arg1 : i32, i32
  }
}

</mosaic_0001>

<llo_original>
// kernel: basic_block_forward.2
$region0: #{basic_block_forward.2}
  #allocation0 [shape = 'u32[]', space=smem, size = 0x4, offset = 0x4, fixed_abs, tag = 'smem constant byte address 0x4 - core index']
  #allocation1 [shape = 'u32[144,128]{1,0:T(1,128)}', space=vmem, size = 0x12000, scoped, tag = 'internal scratch']
  %s0 = inlined_call_operand.vmem [shape: bf16[128,128], index: 0, kind: input, shape index: {}]
  %s1 = inlined_call_operand.vmem [shape: bf16[128,128], index: 1, kind: input, shape index: {}]
  %s2 = inlined_call_operand.vmem [shape: f32[1,128], index: 2, kind: input, shape index: {}]
  %s3 = inlined_call_operand.vmem [shape: f32[1,128], index: 3, kind: input, shape index: {}]
  %s4 = inlined_call_operand.vmem [shape: bf16[128,128], index: 4, kind: input, shape index: {}]
  %s5 = inlined_call_operand.vmem [shape: f32[1,128], index: 5, kind: input, shape index: {}]
  %s6 = inlined_call_operand.vmem [shape: f32[1,128], index: 6, kind: input, shape index: {}]
  %s7 = inlined_call_operand.vmem [shape: bf16[128,128], index: 7, kind: output, shape index: {0}]
  %s8 = inlined_call_operand.vmem [shape: bf16[128,128], index: 8, kind: output, shape index: {1}]
  %9 = xla_tuple %s7, %s8
  %s10 = sld [smem:[#allocation0]]
  $region69: #{basic_block_forward.2} parent=0
    _
  %s12 = ssub.s32 1, %s10
  %s13 = scalar_select 0, %s12, %s10
  loop: start=0, step=1, limit=4
  $region2: #{basic_block_forward.2} parent=0 // loop_pre_header
    _
  $region3: #{basic_block_forward.2} parent=0 // loop_header
    %s15 = sphi 0, %s19
    %p16 = scmp.ge.s32.totalorder %s15, 4
    %s22 = sphi 0, %s34
    %s23 = sphi 0, %s30
    %s24 = sphi 0, %s22
    %s25 = sphi 0, %s23
    %s26 = sphi 0, %s24
    %s27 = sphi 0, %s25
    %s37 = sphi 0, %s39
    %s40 = sphi 0, %s37
    %s41 = sphi 0, %s40
    %s57 = sphi 0, %s41
    %s63 = sphi 0, %s65
    %s66 = sphi 0, %s63
    %s67 = sphi 0, %s66
    %s83 = sphi 0, %s67
    %s89 = sphi 0, %s91
    %s92 = sphi 0, %s89
    %s93 = sphi 0, %s92
    %s109 = sphi 0, %s93
    %s115 = sphi 0, %s117
    %s118 = sphi 0, %s115
    %s119 = sphi 0, %s118
    %s135 = sphi 0, %s119
    %s141 = sphi 0, %s143
    %s144 = sphi 0, %s141
    %s145 = sphi 0, %s144
    %s161 = sphi 0, %s145
    %s167 = sphi 0, %s169
    %s170 = sphi 0, %s167
    %s171 = sphi 0, %s170
    %s187 = sphi 0, %s171
    %s193 = sphi 0, %s195
    %s196 = sphi 0, %s193
    %s197 = sphi 0, %s196
    %s213 = sphi 0, %s197
    %s221 = sphi 0, %s223
    %s224 = sphi 0, %s221
    %s225 = sphi 0, %s224
    %s241 = sphi 0, %s225
    %s249 = sphi 0, %s251
    %s252 = sphi 0, %s249
    %s253 = sphi 0, %s252
    %s269 = sphi 0, %s253
  $region4: #{basic_block_forward.2} parent=0 // loop_header_branch
    %18 = sbr.rel (%p16) target = $region8
  $region5: #{basic_block_forward.2} parent=0 // loop_body
    %s20 = ssub.s32 %s15, 1
    %s21 = ssub.s32 %s15, 2
    %s28 = sadd.s32 1, %s23
    %p29 = scmp.ge.s32.totalorder %s28, 1
    %s30 = scalar_select %p29, 0, %s28
    %s31 = sadd.s32 1, %s22
    %s32 = scalar_select %p29, %s31, %s22
    %p33 = scmp.ge.s32.totalorder %s32, 2
    %s34 = scalar_select %p33, 0, %s32
    %s35 = ssub.s32 %s22, %s34
    %p36 = scmp.eq.s32.totalorder %s35, 0
    %s38 = sadd.s32 %s37, 1
    %s39 = scalar_select %p36, %s37, %s38
    %p42 = pneg %p36
    %p43 = scmp.eq.s32.totalorder %s15, 1
    %p44 = por %p42, %p43
    %p45 = scmp.ne.s32.totalorder %s37, %s40
    %p46 = scmp.eq.s32.totalorder %s15, 0
    %p47 = por %p45, %p46
    %p48 = scmp.ne.s32.totalorder %s37, %s40
    %p49 = scmp.eq.s32.totalorder %s20, 1
    %p50 = por %p48, %p49
    %p51 = scmp.ne.s32.totalorder %s40, %s41
    %p52 = scmp.eq.s32.totalorder %s20, 0
    %p53 = por %p51, %p52
    %p54 = scmp.ne.s32.totalorder %s40, %s41
    %p55 = scmp.eq.s32.totalorder %s21, 1
    %p56 = por %p54, %p55
    %p58 = scmp.ne.s32.totalorder %s41, %s57
    %p59 = scmp.eq.s32.totalorder %s21, 0
    %p60 = por %p58, %p59
    %s61 = ssub.s32 %s23, %s30
    %p62 = scmp.eq.s32.totalorder %s61, 0
    %s64 = sadd.s32 %s63, 1
    %s65 = scalar_select %p62, %s63, %s64
    %p68 = pneg %p62
    %p69 = scmp.eq.s32.totalorder %s15, 1
    %p70 = por %p68, %p69
    %p71 = scmp.ne.s32.totalorder %s63, %s66
    %p72 = scmp.eq.s32.totalorder %s15, 0
    %p73 = por %p71, %p72
    %p74 = scmp.ne.s32.totalorder %s63, %s66
    %p75 = scmp.eq.s32.totalorder %s20, 1
    %p76 = por %p74, %p75
    %p77 = scmp.ne.s32.totalorder %s66, %s67
    %p78 = scmp.eq.s32.totalorder %s20, 0
    %p79 = por %p77, %p78
    %p80 = scmp.ne.s32.totalorder %s66, %s67
    %p81 = scmp.eq.s32.totalorder %s21, 1
    %p82 = por %p80, %p81
    %p84 = scmp.ne.s32.totalorder %s67, %s83
    %p85 = scmp.eq.s32.totalorder %s21, 0
    %p86 = por %p84, %p85
    %s87 = ssub.s32 %s23, %s30
    %p88 = scmp.eq.s32.totalorder %s87, 0
    %s90 = sadd.s32 %s89, 1
    %s91 = scalar_select %p88, %s89, %s90
    %p94 = pneg %p88
    %p95 = scmp.eq.s32.totalorder %s15, 1
    %p96 = por %p94, %p95
    %p97 = scmp.ne.s32.totalorder %s89, %s92
    %p98 = scmp.eq.s32.totalorder %s15, 0
    %p99 = por %p97, %p98
    %p100 = scmp.ne.s32.totalorder %s89, %s92
    %p101 = scmp.eq.s32.totalorder %s20, 1
    %p102 = por %p100, %p101
    %p103 = scmp.ne.s32.totalorder %s92, %s93
    %p104 = scmp.eq.s32.totalorder %s20, 0
    %p105 = por %p103, %p104
    %p106 = scmp.ne.s32.totalorder %s92, %s93
    %p107 = scmp.eq.s32.totalorder %s21, 1
    %p108 = por %p106, %p107
    %p110 = scmp.ne.s32.totalorder %s93, %s109
    %p111 = scmp.eq.s32.totalorder %s21, 0
    %p112 = por %p110, %p111
    %s113 = ssub.s32 %s23, %s30
    %p114 = scmp.eq.s32.totalorder %s113, 0
    %s116 = sadd.s32 %s115, 1
    %s117 = scalar_select %p114, %s115, %s116
    %p120 = pneg %p114
    %p121 = scmp.eq.s32.totalorder %s15, 1
    %p122 = por %p120, %p121
    %p123 = scmp.ne.s32.totalorder %s115, %s118
    %p124 = scmp.eq.s32.totalorder %s15, 0
    %p125 = por %p123, %p124
    %p126 = scmp.ne.s32.totalorder %s115, %s118
    %p127 = scmp.eq.s32.totalorder %s20, 1
    %p128 = por %p126, %p127
    %p129 = scmp.ne.s32.totalorder %s118, %s119
    %p130 = scmp.eq.s32.totalorder %s20, 0
    %p131 = por %p129, %p130
    %p132 = scmp.ne.s32.totalorder %s118, %s119
    %p133 = scmp.eq.s32.totalorder %s21, 1
    %p134 = por %p132, %p133
    %p136 = scmp.ne.s32.totalorder %s119, %s135
    %p137 = scmp.eq.s32.totalorder %s21, 0
    %p138 = por %p136, %p137
    %s139 = ssub.s32 %s23, %s30
    %p140 = scmp.eq.s32.totalorder %s139, 0
    %s142 = sadd.s32 %s141, 1
    %s143 = scalar_select %p140, %s141, %s142
    %p146 = pneg %p140
    %p147 = scmp.eq.s32.totalorder %s15, 1
    %p148 = por %p146, %p147
    %p149 = scmp.ne.s32.totalorder %s141, %s144
    %p150 = scmp.eq.s32.totalorder %s15, 0
    %p151 = por %p149, %p150
    %p152 = scmp.ne.s32.totalorder %s141, %s144
    %p153 = scmp.eq.s32.totalorder %s20, 1
    %p154 = por %p152, %p153
    %p155 = scmp.ne.s32.totalorder %s144, %s145
    %p156 = scmp.eq.s32.totalorder %s20, 0
    %p157 = por %p155, %p156
    %p158 = scmp.ne.s32.totalorder %s144, %s145
    %p159 = scmp.eq.s32.totalorder %s21, 1
    %p160 = por %p158, %p159
    %p162 = scmp.ne.s32.totalorder %s145, %s161
    %p163 = scmp.eq.s32.totalorder %s21, 0
    %p164 = por %p162, %p163
    %s165 = ssub.s32 %s23, %s30
    %p166 = scmp.eq.s32.totalorder %s165, 0
    %s168 = sadd.s32 %s167, 1
    %s169 = scalar_select %p166, %s167, %s168
    %p172 = pneg %p166
    %p173 = scmp.eq.s32.totalorder %s15, 1
    %p174 = por %p172, %p173
    %p175 = scmp.ne.s32.totalorder %s167, %s170
    %p176 = scmp.eq.s32.totalorder %s15, 0
    %p177 = por %p175, %p176
    %p178 = scmp.ne.s32.totalorder %s167, %s170
    %p179 = scmp.eq.s32.totalorder %s20, 1
    %p180 = por %p178, %p179
    %p181 = scmp.ne.s32.totalorder %s170, %s171
    %p182 = scmp.eq.s32.totalorder %s20, 0
    %p183 = por %p181, %p182
    %p184 = scmp.ne.s32.totalorder %s170, %s171
    %p185 = scmp.eq.s32.totalorder %s21, 1
    %p186 = por %p184, %p185
    %p188 = scmp.ne.s32.totalorder %s171, %s187
    %p189 = scmp.eq.s32.totalorder %s21, 0
    %p190 = por %p188, %p189
    %s191 = ssub.s32 %s23, %s30
    %p192 = scmp.eq.s32.totalorder %s191, 0
    %s194 = sadd.s32 %s193, 1
    %s195 = scalar_select %p192, %s193, %s194
    %p198 = pneg %p192
    %p199 = scmp.eq.s32.totalorder %s15, 1
    %p200 = por %p198, %p199
    %p201 = scmp.ne.s32.totalorder %s193, %s196
    %p202 = scmp.eq.s32.totalorder %s15, 0
    %p203 = por %p201, %p202
    %p204 = scmp.ne.s32.totalorder %s193, %s196
    %p205 = scmp.eq.s32.totalorder %s20, 1
    %p206 = por %p204, %p205
    %p207 = scmp.ne.s32.totalorder %s196, %s197
    %p208 = scmp.eq.s32.totalorder %s20, 0
    %p209 = por %p207, %p208
    %p210 = scmp.ne.s32.totalorder %s196, %s197
    %p211 = scmp.eq.s32.totalorder %s21, 1
    %p212 = por %p210, %p211
    %p214 = scmp.ne.s32.totalorder %s197, %s213
    %p215 = scmp.eq.s32.totalorder %s21, 0
    %p216 = por %p214, %p215
    %s217 = ssub.s32 %s22, %s34
    %s218 = ssub.s32 %s23, %s30
    %s219 = sor.u32 %s217, %s218
    %p220 = scmp.eq.s32.totalorder %s219, 0
    %s222 = sadd.s32 %s221, 1
    %s223 = scalar_select %p220, %s221, %s222
    %p226 = pneg %p220
    %p227 = scmp.eq.s32.totalorder %s15, 1
    %p228 = por %p226, %p227
    %p229 = scmp.ne.s32.totalorder %s221, %s224
    %p230 = scmp.eq.s32.totalorder %s15, 0
    %p231 = por %p229, %p230
    %p232 = scmp.ne.s32.totalorder %s221, %s224
    %p233 = scmp.eq.s32.totalorder %s20, 1
    %p234 = por %p232, %p233
    %p235 = scmp.ne.s32.totalorder %s224, %s225
    %p236 = scmp.eq.s32.totalorder %s20, 0
    %p237 = por %p235, %p236
    %p238 = scmp.ne.s32.totalorder %s224, %s225
    %p239 = scmp.eq.s32.totalorder %s21, 1
    %p240 = por %p238, %p239
    %p242 = scmp.ne.s32.totalorder %s225, %s241
    %p243 = scmp.eq.s32.totalorder %s21, 0
    %p244 = por %p242, %p243
    %s245 = ssub.s32 %s22, %s34
    %s246 = ssub.s32 %s23, %s30
    %s247 = sor.u32 %s245, %s246
    %p248 = scmp.eq.s32.totalorder %s247, 0
    %s250 = sadd.s32 %s249, 1
    %s251 = scalar_select %p248, %s249, %s250
    %p254 = pneg %p248
    %p255 = scmp.eq.s32.totalorder %s15, 1
    %p256 = por %p254, %p255
    %p257 = scmp.ne.s32.totalorder %s249, %s252
    %p258 = scmp.eq.s32.totalorder %s15, 0
    %p259 = por %p257, %p258
    %p260 = scmp.ne.s32.totalorder %s249, %s252
    %p261 = scmp.eq.s32.totalorder %s20, 1
    %p262 = por %p260, %p261
    %p263 = scmp.ne.s32.totalorder %s252, %s253
    %p264 = scmp.eq.s32.totalorder %s20, 0
    %p265 = por %p263, %p264
    %p266 = scmp.ne.s32.totalorder %s252, %s253
    %p267 = scmp.eq.s32.totalorder %s21, 1
    %p268 = por %p266, %p267
    %p270 = scmp.ne.s32.totalorder %s253, %s269
    %p271 = scmp.eq.s32.totalorder %s21, 0
    %p272 = por %p270, %p271
    %p273 = scmp.le.s32.totalorder 1, %s15
    %p274 = scmp.lt.s32.totalorder %s15, 3
    %p275 = pnand %p273, %p274
    %p276 = pneg %p275
    // Predicated region
    $region9: #{basic_block_forward.2} parent=5 // pred_check
      _
    $region10: #{basic_block_forward.2} parent=5 // pred_check_branch
      %278 = sbr.rel (%p275) target = $region12
    $region11: #{basic_block_forward.2} parent=5 // pred_region
      %s279 = ssub.s32 %s15, 1
      // Predicated region
      $region13: #{basic_block_forward.2} parent=11 // pred_check
        %p280 = pneg %p79
      $region14: #{basic_block_forward.2} parent=11 // pred_check_branch
        %282 = sbr.rel (%p280) target = $region16
      $region15: #{basic_block_forward.2} parent=11 // pred_region
        %p283 = scmp.lt.s32.totalorder %s25, 0
        %s284 = scalar_select %p283, %s25, 0
        %s285 = smul.addr %s284, 4
        %s286 = scalar_lea.vmem %s1, %s285
      $region16: #{basic_block_forward.2} parent=11 // pred_fallthru
        _
      // Predicated region
      $region17: #{basic_block_forward.2} parent=11 // pred_check
        %p287 = pneg %p105
      $region18: #{basic_block_forward.2} parent=11 // pred_check_branch
        %289 = sbr.rel (%p287) target = $region20
      $region19: #{basic_block_forward.2} parent=11 // pred_region
        %p290 = scmp.lt.s32.totalorder %s25, 0
        %s291 = scalar_select %p290, %s25, 0
        %s292 = scalar_lea.vmem %s2, %s291
      $region20: #{basic_block_forward.2} parent=11 // pred_fallthru
        _
      // Predicated region
      $region21: #{basic_block_forward.2} parent=11 // pred_check
        %p293 = pneg %p131
      $region22: #{basic_block_forward.2} parent=11 // pred_check_branch
        %295 = sbr.rel (%p293) target = $region24
      $region23: #{basic_block_forward.2} parent=11 // pred_region
        %p296 = scmp.lt.s32.totalorder %s25, 0
        %s297 = scalar_select %p296, %s25, 0
        %s298 = scalar_lea.vmem %s3, %s297
      $region24: #{basic_block_forward.2} parent=11 // pred_fallthru
        _
      // Predicated region
      $region25: #{basic_block_forward.2} parent=11 // pred_check
        %p299 = pneg %p157
      $region26: #{basic_block_forward.2} parent=11 // pred_check_branch
        %301 = sbr.rel (%p299) target = $region28
      $region27: #{basic_block_forward.2} parent=11 // pred_region
        %p302 = scmp.lt.s32.totalorder %s25, 0
        %s303 = scalar_select %p302, %s25, 0
        %s304 = smul.addr %s303, 4
        %s305 = scalar_lea.vmem %s4, %s304
      $region28: #{basic_block_forward.2} parent=11 // pred_fallthru
        _
      // Predicated region
      $region29: #{basic_block_forward.2} parent=11 // pred_check
        %p306 = pneg %p183
      $region30: #{basic_block_forward.2} parent=11 // pred_check_branch
        %308 = sbr.rel (%p306) target = $region32
      $region31: #{basic_block_forward.2} parent=11 // pred_region
        %p309 = scmp.lt.s32.totalorder %s25, 0
        %s310 = scalar_select %p309, %s25, 0
        %s311 = scalar_lea.vmem %s5, %s310
      $region32: #{basic_block_forward.2} parent=11 // pred_fallthru
        _
      // Predicated region
      $region33: #{basic_block_forward.2} parent=11 // pred_check
        %p312 = pneg %p209
      $region34: #{basic_block_forward.2} parent=11 // pred_check_branch
        %314 = sbr.rel (%p312) target = $region36
      $region35: #{basic_block_forward.2} parent=11 // pred_region
        %p315 = scmp.lt.s32.totalorder %s25, 0
        %s316 = scalar_select %p315, %s25, 0
        %s317 = scalar_lea.vmem %s6, %s316
      $region36: #{basic_block_forward.2} parent=11 // pred_fallthru
        _
    $region12: #{basic_block_forward.2} parent=5 // pred_fallthru
      _
    %p318 = scmp.lt.s32.totalorder %s15, 2
    // Predicated region
    $region37: #{basic_block_forward.2} parent=5 // pred_check
      %p319 = pneg %p318
    $region38: #{basic_block_forward.2} parent=5 // pred_check_branch
      %321 = sbr.rel (%p319) target = $region40
    $region39: #{basic_block_forward.2} parent=5 // pred_region
      // Predicated region
      $region41: #{basic_block_forward.2} parent=39 // pred_check
        %p322 = pneg %p47
      $region42: #{basic_block_forward.2} parent=39 // pred_check_branch
        %324 = sbr.rel (%p322) target = $region44
      $region43: #{basic_block_forward.2} parent=39 // pred_region
        %s325 = smul.u32 8, %s22
        %p326 = scmp.lt.s32.totalorder %s325, 15
        %s327 = scalar_select %p326, %s325, 15
        %s328 = smul.addr %s327, 4
        %s329 = scalar_lea.vmem %s0, %s328
        %s330 = smul.u32 8, %s22
      $region44: #{basic_block_forward.2} parent=39 // pred_fallthru
        _
    $region40: #{basic_block_forward.2} parent=5 // pred_fallthru
      _
    %p331 = scmp.le.s32.totalorder 1, %s15
    %p332 = scmp.lt.s32.totalorder %s15, 3
    %p333 = pnand %p331, %p332
    %p334 = pneg %p333
    // Predicated region
    $region45: #{basic_block_forward.2} parent=5 // pred_check
      _
    $region46: #{basic_block_forward.2} parent=5 // pred_check_branch
      %336 = sbr.rel (%p333) target = $region48
    $region47: #{basic_block_forward.2} parent=5 // pred_region
      %s337 = ssub.s32 %s15, 1
      %s338 = smul.u32 8, %s24
      %p339 = scmp.lt.s32.totalorder %s338, 15
      %s340 = scalar_select %p339, %s338, 15
      %s341 = smul.addr %s340, 4
      %s342 = scalar_lea.vmem %s0, %s341
      %p343 = pneg %p53
      %p344 = pneg %p50
      %p345 = scmp.lt.s32.totalorder %s25, 0
      %s346 = scalar_select %p345, %s25, 0
      %s347 = smul.addr %s346, 4
      %s348 = scalar_lea.vmem %s1, %s347
      %p349 = pneg %p79
      %p350 = pneg %p76
      %p351 = scmp.lt.s32.totalorder %s25, 0
      %s352 = scalar_select %p351, %s25, 0
      %s353 = scalar_lea.vmem %s2, %s352
      %p354 = pneg %p105
      %p355 = pneg %p102
      %p356 = scmp.lt.s32.totalorder %s25, 0
      %s357 = scalar_select %p356, %s25, 0
      %s358 = scalar_lea.vmem %s3, %s357
      %p359 = pneg %p131
      %p360 = pneg %p128
      %p361 = scmp.lt.s32.totalorder %s25, 0
      %s362 = scalar_select %p361, %s25, 0
      %s363 = smul.addr %s362, 4
      %s364 = scalar_lea.vmem %s4, %s363
      %p365 = pneg %p157
      %p366 = pneg %p154
      %p367 = scmp.lt.s32.totalorder %s25, 0
      %s368 = scalar_select %p367, %s25, 0
      %s369 = scalar_lea.vmem %s5, %s368
      %p370 = pneg %p183
      %p371 = pneg %p180
      %p372 = scmp.lt.s32.totalorder %s25, 0
      %s373 = scalar_select %p372, %s25, 0
      %s374 = scalar_lea.vmem %s6, %s373
      %p375 = pneg %p209
      %p376 = pneg %p206
      %p377 = pneg %p237
      %p378 = pneg %p234
      %s379 = smul.u32 8, %s24
      %p380 = scmp.lt.s32.totalorder %s379, 15
      %s381 = scalar_select %p380, %s379, 15
      %p382 = scmp.lt.s32.totalorder %s25, 0
      %s383 = scalar_select %p382, %s25, 0
      %s384 = sadd.s32 %s383, %s381
      %s385 = smul.addr %s384, 4
      %s386 = scalar_lea.vmem %s7, %s385
      %p387 = pneg %p265
      %p388 = pneg %p262
      %s389 = smul.u32 8, %s24
      %p390 = scmp.lt.s32.totalorder %s389, 15
      %s391 = scalar_select %p390, %s389, 15
      %p392 = scmp.lt.s32.totalorder %s25, 0
      %s393 = scalar_select %p392, %s25, 0
      %s394 = sadd.s32 %s393, %s391
      %s395 = smul.addr %s394, 4
      %s396 = scalar_lea.vmem %s8, %s395
      %s397 = smul.u32 8, %s24
      %p398 = scmp.lt.s32.totalorder %s397, 15
      %s399 = scalar_select %p398, %s397, 15
      %s400 = smul.addr %s399, 4
      %s401 = scalar_lea.vmem %s0, %s400
      %s402 = smul.u32 8, %s24
      %p403 = scmp.lt.s32.totalorder %s25, 0
      %s404 = scalar_select %p403, %s25, 0
      %s405 = smul.addr %s404, 4
      %s406 = scalar_lea.vmem %s1, %s405
      %p407 = scmp.lt.s32.totalorder %s25, 0
      %s408 = scalar_select %p407, %s25, 0
      %s409 = scalar_lea.vmem %s2, %s408
      %p410 = scmp.lt.s32.totalorder %s25, 0
      %s411 = scalar_select %p410, %s25, 0
      %s412 = scalar_lea.vmem %s3, %s411
      %p413 = scmp.lt.s32.totalorder %s25, 0
      %s414 = scalar_select %p413, %s25, 0
      %s415 = smul.addr %s414, 4
      %s416 = scalar_lea.vmem %s4, %s415
      %p417 = scmp.lt.s32.totalorder %s25, 0
      %s418 = scalar_select %p417, %s25, 0
      %s419 = scalar_lea.vmem %s5, %s418
      %p420 = scmp.lt.s32.totalorder %s25, 0
      %s421 = scalar_select %p420, %s25, 0
      %s422 = scalar_lea.vmem %s6, %s421
      %s423 = smul.u32 8, %s24
      %p424 = scmp.lt.s32.totalorder %s423, 15
      %s425 = scalar_select %p424, %s423, 15
      %p426 = scmp.lt.s32.totalorder %s25, 0
      %s427 = scalar_select %p426, %s25, 0
      %s428 = sadd.s32 %s427, %s425
      %s429 = smul.addr %s428, 4
      %s430 = scalar_lea.vmem %s7, %s429
      %s431 = smul.u32 8, %s24
      %s432 = smul.u32 8, %s24
      %p433 = scmp.lt.s32.totalorder %s432, 15
      %s434 = scalar_select %p433, %s432, 15
      %p435 = scmp.lt.s32.totalorder %s25, 0
      %s436 = scalar_select %p435, %s25, 0
      %s437 = sadd.s32 %s436, %s434
      %s438 = smul.addr %s437, 4
      %s439 = scalar_lea.vmem %s8, %s438
      %s440 = smul.u32 8, %s24
      %v442 = vld [vmem:[%s401] sm:$0xf]
      %v443 = vld [vmem:[%s401 + $0x4] sm:$0xf]
      %v444 = vld [vmem:[%s401 + $0x8] sm:$0xf]
      %v445 = vld [vmem:[%s401 + $0xc] sm:$0xf]
      %v446 = vld [vmem:[%s401 + $0x10] sm:$0xf]
      %v447 = vld [vmem:[%s401 + $0x14] sm:$0xf]
      %v448 = vld [vmem:[%s401 + $0x18] sm:$0xf]
      %v449 = vld [vmem:[%s401 + $0x1c] sm:$0xf]
      %v450 = vld [vmem:[%s406] sm:$0xf]
      %v451 = vld [vmem:[%s406 + $0x4] sm:$0xf]
      %v452 = vld [vmem:[%s406 + $0x8] sm:$0xf]
      %v453 = vld [vmem:[%s406 + $0xc] sm:$0xf]
      %v454 = vld [vmem:[%s406 + $0x10] sm:$0xf]
      %v455 = vld [vmem:[%s406 + $0x14] sm:$0xf]
      %v456 = vld [vmem:[%s406 + $0x18] sm:$0xf]
      %v457 = vld [vmem:[%s406 + $0x1c] sm:$0xf]
      %v458 = vld [vmem:[%s406 + $0x20] sm:$0xf]
      %v459 = vld [vmem:[%s406 + $0x24] sm:$0xf]
      %v460 = vld [vmem:[%s406 + $0x28] sm:$0xf]
      %v461 = vld [vmem:[%s406 + $0x2c] sm:$0xf]
      %v462 = vld [vmem:[%s406 + $0x30] sm:$0xf]
      %v463 = vld [vmem:[%s406 + $0x34] sm:$0xf]
      %v464 = vld [vmem:[%s406 + $0x38] sm:$0xf]
      %v465 = vld [vmem:[%s406 + $0x3c] sm:$0xf]
      %v474 = vunpack.c.l.b16 %v442
      %v475 = vunpack.c.l.b16 %v443
      %v476 = vunpack.c.l.b16 %v444
      %v477 = vunpack.c.l.b16 %v445
      %v478 = vunpack.c.l.b16 %v446
      %v479 = vunpack.c.l.b16 %v447
      %v480 = vunpack.c.l.b16 %v448
      %v481 = vunpack.c.l.b16 %v449
      %v482 = vpack.c.b16 %v475, %v474
      %v483 = vpack.c.b16 %v477, %v476
      %v484 = vpack.c.b16 %v479, %v478
      %v485 = vpack.c.b16 %v481, %v480
      %v506 = vunpack.c.l.b16 %v450
      %v507 = vunpack.c.l.b16 %v451
      %v508 = vunpack.c.l.b16 %v452
      %v509 = vunpack.c.l.b16 %v453
      %v510 = vunpack.c.l.b16 %v454
      %v511 = vunpack.c.l.b16 %v455
      %v512 = vunpack.c.l.b16 %v456
      %v513 = vunpack.c.l.b16 %v457
      %v514 = vunpack.c.l.b16 %v458
      %v515 = vunpack.c.l.b16 %v459
      %v516 = vunpack.c.l.b16 %v460
      %v517 = vunpack.c.l.b16 %v461
      %v518 = vunpack.c.l.b16 %v462
      %v519 = vunpack.c.l.b16 %v463
      %v520 = vunpack.c.l.b16 %v464
      %v521 = vunpack.c.l.b16 %v465
      %v522 = vpack.c.b16 %v507, %v506
      %v523 = vpack.c.b16 %v509, %v508
      %v524 = vpack.c.b16 %v511, %v510
      %v525 = vpack.c.b16 %v513, %v512
      %v526 = vpack.c.b16 %v515, %v514
      %v527 = vpack.c.b16 %v517, %v516
      %v528 = vpack.c.b16 %v519, %v518
      %v529 = vpack.c.b16 %v521, %v520
      %538 = vmatprep.subr.bf16.mxu0 0
      %539 = vmatpush1.bf16.msra.mxu0 %v522
      %540 = vmatprep.subr.bf16.mxu0 0
      %541 = vmatpush1.bf16.msra.mxu0 %v523
      %542 = vmatprep.subr.bf16.mxu0 0
      %543 = vmatpush1.bf16.msra.mxu0 %v524
      %544 = vmatprep.subr.bf16.mxu0 0
      %545 = vmatpush1.bf16.msra.mxu0 %v525
      %546 = vmatprep.subr.bf16.mxu0 0
      %547 = vmatpush1.bf16.msra.mxu0 %v526
      %548 = vmatprep.subr.bf16.mxu0 0
      %549 = vmatpush1.bf16.msra.mxu0 %v527
      %550 = vmatprep.subr.bf16.mxu0 0
      %551 = vmatpush1.bf16.msra.mxu0 %v528
      %552 = vmatprep.subr.bf16.mxu0 0
      %553 = vmatpush1.bf16.msra.mxu0 %v529
      %554 = vmatprep.subr.bf16.mxu0 0
      %555 = vmatpush1.bf16.msra.mxu0 0
      %556 = vmatprep.subr.bf16.mxu0 0
      %557 = vmatpush1.bf16.msra.mxu0 0
      %558 = vmatprep.subr.bf16.mxu0 0
      %559 = vmatpush1.bf16.msra.mxu0 0
      %560 = vmatprep.subr.bf16.mxu0 0
      %561 = vmatpush1.bf16.msra.mxu0 0
      %562 = vmatprep.subr.bf16.mxu0 0
      %563 = vmatpush1.bf16.msra.mxu0 0
      %564 = vmatprep.subr.bf16.mxu0 0
      %565 = vmatpush1.bf16.msra.mxu0 0
      %566 = vmatprep.subr.bf16.mxu0 0
      %567 = vmatpush1.bf16.msra.mxu0 0
      %568 = vmatprep.subr.bf16.mxu0 0
      %569 = vmatpush1.bf16.msra.mxu0 0
      %570 = vmatprep.mubr.bf16.mxu0 0
      %571 = vmatmul.mubr.bf16.gmra.mrb[0].mxu0 %v482
      %v572 = vpop.f32.mrb[0].mxu0
      %v573 = vadd.f32 0.0, %v572
      %v574 = vpop.f32.mrb[0].mxu0
      %v575 = vpop.f32.mrb[0].mxu0
      %v576 = vadd.f32 0.0, %v575
      %v577 = vpop.f32.mrb[0].mxu0
      %578 = vmatprep.mubr.bf16.mxu0 0
      %579 = vmatmul.mubr.bf16.gmra.mrb[0].mxu0 %v483
      %v580 = vpop.f32.mrb[0].mxu0
      %v581 = vadd.f32 0.0, %v580
      %v582 = vpop.f32.mrb[0].mxu0
      %v583 = vpop.f32.mrb[0].mxu0
      %v584 = vadd.f32 0.0, %v583
      %v585 = vpop.f32.mrb[0].mxu0
      %586 = vmatprep.mubr.bf16.mxu0 0
      %587 = vmatmul.mubr.bf16.gmra.mrb[0].mxu0 %v484
      %v588 = vpop.f32.mrb[0].mxu0
      %v589 = vadd.f32 0.0, %v588
      %v590 = vpop.f32.mrb[0].mxu0
      %v591 = vpop.f32.mrb[0].mxu0
      %v592 = vadd.f32 0.0, %v591
      %v593 = vpop.f32.mrb[0].mxu0
      %594 = vmatprep.mubr.bf16.mxu0 0
      %595 = vmatmul.mubr.bf16.gmra.mrb[0].mxu0 %v485
      %v596 = vpop.f32.mrb[0].mxu0
      %v597 = vadd.f32 0.0, %v596
      %v598 = vpop.f32.mrb[0].mxu0
      %v599 = vpop.f32.mrb[0].mxu0
      %v600 = vadd.f32 0.0, %v599
      %v601 = vpop.f32.mrb[0].mxu0
      %602 = vdwg.mxu0
      %v603 = vld [vmem:[%s409] sm:$0x1]
      %v605 = vlaneseq
      %v606 = vshrl.u32 %v605, 7
      %v607 = vsub.s32 0, %v606
      %v608 = vrot.slane %v603, %v607
      %v610 = vmul.f32 %v573, %v608
      %v611 = vmul.f32 %v576, %v608
      %v612 = vmul.f32 %v581, %v608
      %v613 = vmul.f32 %v584, %v608
      %v614 = vmul.f32 %v589, %v608
      %v615 = vmul.f32 %v592, %v608
      %v616 = vmul.f32 %v597, %v608
      %v617 = vmul.f32 %v600, %v608
      %v618 = vld [vmem:[%s412] sm:$0x1]
      %v620 = vlaneseq
      %v621 = vshrl.u32 %v620, 7
      %v622 = vsub.s32 0, %v621
      %v623 = vrot.slane %v618, %v622
      %v625 = vadd.f32 %v610, %v623
      %v626 = vadd.f32 %v611, %v623
      %v627 = vadd.f32 %v612, %v623
      %v628 = vadd.f32 %v613, %v623
      %v629 = vadd.f32 %v614, %v623
      %v630 = vadd.f32 %v615, %v623
      %v631 = vadd.f32 %v616, %v623
      %v632 = vadd.f32 %v617, %v623
      %vm633 = vcmp.gt.f32.partialorder %v625, 0.0
      %vm634 = vcmp.gt.f32.partialorder %v626, 0.0
      %vm635 = vcmp.gt.f32.partialorder %v627, 0.0
      %vm636 = vcmp.gt.f32.partialorder %v628, 0.0
      %vm637 = vcmp.gt.f32.partialorder %v629, 0.0
      %vm638 = vcmp.gt.f32.partialorder %v630, 0.0
      %vm639 = vcmp.gt.f32.partialorder %v631, 0.0
      %vm640 = vcmp.gt.f32.partialorder %v632, 0.0
      %v641 = vmin.f32 %v625, 0.0
      %v642 = vmin.f32 %v626, 0.0
      %v643 = vmin.f32 %v627, 0.0
      %v644 = vmin.f32 %v628, 0.0
      %v645 = vmin.f32 %v629, 0.0
      %v646 = vmin.f32 %v630, 0.0
      %v647 = vmin.f32 %v631, 0.0
      %v648 = vmin.f32 %v632, 0.0
      %v649 = vmul.f32 %v641, 1.442695
      %v650 = vpow.pop %v649
      %v651 = vmul.f32 %v642, 1.442695
      %v652 = vpow.pop %v651
      %v653 = vmul.f32 %v643, 1.442695
      %v654 = vpow.pop %v653
      %v655 = vmul.f32 %v644, 1.442695
      %v656 = vpow.pop %v655
      %v657 = vmul.f32 %v645, 1.442695
      %v658 = vpow.pop %v657
      %v659 = vmul.f32 %v646, 1.442695
      %v660 = vpow.pop %v659
      %v661 = vmul.f32 %v647, 1.442695
      %v662 = vpow.pop %v661
      %v663 = vmul.f32 %v648, 1.442695
      %v664 = vpow.pop %v663
      %v665 = vsub.f32 %v650, 1.0
      %v666 = vsub.f32 %v652, 1.0
      %v667 = vsub.f32 %v654, 1.0
      %v668 = vsub.f32 %v656, 1.0
      %v669 = vsub.f32 %v658, 1.0
      %v670 = vsub.f32 %v660, 1.0
      %v671 = vsub.f32 %v662, 1.0
      %v672 = vsub.f32 %v664, 1.0
      %v673 = vsel %vm633, %v625, %v665
      %v674 = vsel %vm634, %v626, %v666
      %v675 = vsel %vm635, %v627, %v667
      %v676 = vsel %vm636, %v628, %v668
      %v677 = vsel %vm637, %v629, %v669
      %v678 = vsel %vm638, %v630, %v670
      %v679 = vsel %vm639, %v631, %v671
      %v680 = vsel %vm640, %v632, %v672
      %v681 = vpack.c.bf16 %v674, %v673
      %v682 = vpack.c.bf16 %v676, %v675
      %v683 = vpack.c.bf16 %v678, %v677
      %v684 = vpack.c.bf16 %v680, %v679
      %v689 = vunpack.c.l.b16 %v681
      %v690 = vunpack.c.h.b16 %v681
      %v691 = vunpack.c.l.b16 %v682
      %v692 = vunpack.c.h.b16 %v682
      %v693 = vunpack.c.l.b16 %v683
      %v694 = vunpack.c.h.b16 %v683
      %v695 = vunpack.c.l.b16 %v684
      %v696 = vunpack.c.h.b16 %v684
      %v697 = vpack.c.b16 %v689, %v689
      %v698 = vpack.c.b16 %v690, %v690
      %v699 = vpack.c.b16 %v691, %v691
      %v700 = vpack.c.b16 %v692, %v692
      %v701 = vpack.c.b16 %v693, %v693
      %v702 = vpack.c.b16 %v694, %v694
      %v703 = vpack.c.b16 %v695, %v695
      %v704 = vpack.c.b16 %v696, %v696
      %713 = vst [vmem:[%s430] sm:$0xf] %v697
      %714 = vst [vmem:[%s430 + $0x4] sm:$0xf] %v698
      %715 = vst [vmem:[%s430 + $0x8] sm:$0xf] %v699
      %716 = vst [vmem:[%s430 + $0xc] sm:$0xf] %v700
      %717 = vst [vmem:[%s430 + $0x10] sm:$0xf] %v701
      %718 = vst [vmem:[%s430 + $0x14] sm:$0xf] %v702
      %719 = vst [vmem:[%s430 + $0x18] sm:$0xf] %v703
      %720 = vst [vmem:[%s430 + $0x1c] sm:$0xf] %v704
      %v721 = vld [vmem:[%s416] sm:$0xf]
      %v722 = vld [vmem:[%s416 + $0x4] sm:$0xf]
      %v723 = vld [vmem:[%s416 + $0x8] sm:$0xf]
      %v724 = vld [vmem:[%s416 + $0xc] sm:$0xf]
      %v725 = vld [vmem:[%s416 + $0x10] sm:$0xf]
      %v726 = vld [vmem:[%s416 + $0x14] sm:$0xf]
      %v727 = vld [vmem:[%s416 + $0x18] sm:$0xf]
      %v728 = vld [vmem:[%s416 + $0x1c] sm:$0xf]
      %v729 = vld [vmem:[%s416 + $0x20] sm:$0xf]
      %v730 = vld [vmem:[%s416 + $0x24] sm:$0xf]
      %v731 = vld [vmem:[%s416 + $0x28] sm:$0xf]
      %v732 = vld [vmem:[%s416 + $0x2c] sm:$0xf]
      %v733 = vld [vmem:[%s416 + $0x30] sm:$0xf]
      %v734 = vld [vmem:[%s416 + $0x34] sm:$0xf]
      %v735 = vld [vmem:[%s416 + $0x38] sm:$0xf]
      %v736 = vld [vmem:[%s416 + $0x3c] sm:$0xf]
      %v753 = vunpack.c.l.b16 %v721
      %v754 = vunpack.c.l.b16 %v722
      %v755 = vunpack.c.l.b16 %v723
      %v756 = vunpack.c.l.b16 %v724
      %v757 = vunpack.c.l.b16 %v725
      %v758 = vunpack.c.l.b16 %v726
      %v759 = vunpack.c.l.b16 %v727
      %v760 = vunpack.c.l.b16 %v728
      %v761 = vunpack.c.l.b16 %v729
      %v762 = vunpack.c.l.b16 %v730
      %v763 = vunpack.c.l.b16 %v731
      %v764 = vunpack.c.l.b16 %v732
      %v765 = vunpack.c.l.b16 %v733
      %v766 = vunpack.c.l.b16 %v734
      %v767 = vunpack.c.l.b16 %v735
      %v768 = vunpack.c.l.b16 %v736
      %v769 = vpack.c.b16 %v754, %v753
      %v770 = vpack.c.b16 %v756, %v755
      %v771 = vpack.c.b16 %v758, %v757
      %v772 = vpack.c.b16 %v760, %v759
      %v773 = vpack.c.b16 %v762, %v761
      %v774 = vpack.c.b16 %v764, %v763
      %v775 = vpack.c.b16 %v766, %v765
      %v776 = vpack.c.b16 %v768, %v767
      %785 = vmatprep.subr.bf16.mxu0 0
      %786 = vmatpush1.bf16.msra.mxu0 %v769
      %787 = vmatprep.subr.bf16.mxu0 0
      %788 = vmatpush1.bf16.msra.mxu0 %v770
      %789 = vmatprep.subr.bf16.mxu0 0
      %790 = vmatpush1.bf16.msra.mxu0 %v771
      %791 = vmatprep.subr.bf16.mxu0 0
      %792 = vmatpush1.bf16.msra.mxu0 %v772
      %793 = vmatprep.subr.bf16.mxu0 0
      %794 = vmatpush1.bf16.msra.mxu0 %v773
      %795 = vmatprep.subr.bf16.mxu0 0
      %796 = vmatpush1.bf16.msra.mxu0 %v774
      %797 = vmatprep.subr.bf16.mxu0 0
      %798 = vmatpush1.bf16.msra.mxu0 %v775
      %799 = vmatprep.subr.bf16.mxu0 0
      %800 = vmatpush1.bf16.msra.mxu0 %v776
      %801 = vmatprep.subr.bf16.mxu0 0
      %802 = vmatpush1.bf16.msra.mxu0 0
      %803 = vmatprep.subr.bf16.mxu0 0
      %804 = vmatpush1.bf16.msra.mxu0 0
      %805 = vmatprep.subr.bf16.mxu0 0
      %806 = vmatpush1.bf16.msra.mxu0 0
      %807 = vmatprep.subr.bf16.mxu0 0
      %808 = vmatpush1.bf16.msra.mxu0 0
      %809 = vmatprep.subr.bf16.mxu0 0
      %810 = vmatpush1.bf16.msra.mxu0 0
      %811 = vmatprep.subr.bf16.mxu0 0
      %812 = vmatpush1.bf16.msra.mxu0 0
      %813 = vmatprep.subr.bf16.mxu0 0
      %814 = vmatpush1.bf16.msra.mxu0 0
      %815 = vmatprep.subr.bf16.mxu0 0
      %816 = vmatpush1.bf16.msra.mxu0 0
      %817 = vmatprep.mubr.bf16.mxu0 0
      %818 = vmatmul.mubr.bf16.gmra.mrb[0].mxu0 %v482
      %v819 = vpop.f32.mrb[0].mxu0
      %v820 = vadd.f32 0.0, %v819
      %v821 = vpop.f32.mrb[0].mxu0
      %v822 = vpop.f32.mrb[0].mxu0
      %v823 = vadd.f32 0.0, %v822
      %v824 = vpop.f32.mrb[0].mxu0
      %825 = vmatprep.mubr.bf16.mxu0 0
      %826 = vmatmul.mubr.bf16.gmra.mrb[0].mxu0 %v483
      %v827 = vpop.f32.mrb[0].mxu0
      %v828 = vadd.f32 0.0, %v827
      %v829 = vpop.f32.mrb[0].mxu0
      %v830 = vpop.f32.mrb[0].mxu0
      %v831 = vadd.f32 0.0, %v830
      %v832 = vpop.f32.mrb[0].mxu0
      %833 = vmatprep.mubr.bf16.mxu0 0
      %834 = vmatmul.mubr.bf16.gmra.mrb[0].mxu0 %v484
      %v835 = vpop.f32.mrb[0].mxu0
      %v836 = vadd.f32 0.0, %v835
      %v837 = vpop.f32.mrb[0].mxu0
      %v838 = vpop.f32.mrb[0].mxu0
      %v839 = vadd.f32 0.0, %v838
      %v840 = vpop.f32.mrb[0].mxu0
      %841 = vmatprep.mubr.bf16.mxu0 0
      %842 = vmatmul.mubr.bf16.gmra.mrb[0].mxu0 %v485
      %v843 = vpop.f32.mrb[0].mxu0
      %v844 = vadd.f32 0.0, %v843
      %v845 = vpop.f32.mrb[0].mxu0
      %v846 = vpop.f32.mrb[0].mxu0
      %v847 = vadd.f32 0.0, %v846
      %v848 = vpop.f32.mrb[0].mxu0
      %849 = vdwg.mxu0
      %v850 = vld [vmem:[%s419] sm:$0x1]
      %v852 = vlaneseq
      %v853 = vshrl.u32 %v852, 7
      %v854 = vsub.s32 0, %v853
      %v855 = vrot.slane %v850, %v854
      %v857 = vmul.f32 %v820, %v855
      %v858 = vmul.f32 %v823, %v855
      %v859 = vmul.f32 %v828, %v855
      %v860 = vmul.f32 %v831, %v855
      %v861 = vmul.f32 %v836, %v855
      %v862 = vmul.f32 %v839, %v855
      %v863 = vmul.f32 %v844, %v855
      %v864 = vmul.f32 %v847, %v855
      %v865 = vld [vmem:[%s422] sm:$0x1]
      %v867 = vlaneseq
      %v868 = vshrl.u32 %v867, 7
      %v869 = vsub.s32 0, %v868
      %v870 = vrot.slane %v865, %v869
      %v872 = vadd.f32 %v857, %v870
      %v873 = vadd.f32 %v858, %v870
      %v874 = vadd.f32 %v859, %v870
      %v875 = vadd.f32 %v860, %v870
      %v876 = vadd.f32 %v861, %v870
      %v877 = vadd.f32 %v862, %v870
      %v878 = vadd.f32 %v863, %v870
      %v879 = vadd.f32 %v864, %v870
      %v880 = vpack.c.bf16 %v873, %v872
      %v881 = vpack.c.bf16 %v875, %v874
      %v882 = vpack.c.bf16 %v877, %v876
      %v883 = vpack.c.bf16 %v879, %v878
      %v888 = vunpack.c.l.b16 %v880
      %v889 = vunpack.c.h.b16 %v880
      %v890 = vunpack.c.l.b16 %v881
      %v891 = vunpack.c.h.b16 %v881
      %v892 = vunpack.c.l.b16 %v882
      %v893 = vunpack.c.h.b16 %v882
      %v894 = vunpack.c.l.b16 %v883
      %v895 = vunpack.c.h.b16 %v883
      %v896 = vpack.c.b16 %v888, %v888
      %v897 = vpack.c.b16 %v889, %v889
      %v898 = vpack.c.b16 %v890, %v890
      %v899 = vpack.c.b16 %v891, %v891
      %v900 = vpack.c.b16 %v892, %v892
      %v901 = vpack.c.b16 %v893, %v893
      %v902 = vpack.c.b16 %v894, %v894
      %v903 = vpack.c.b16 %v895, %v895
      %912 = vst [vmem:[%s439] sm:$0xf] %v896
      %913 = vst [vmem:[%s439 + $0x4] sm:$0xf] %v897
      %914 = vst [vmem:[%s439 + $0x8] sm:$0xf] %v898
      %915 = vst [vmem:[%s439 + $0xc] sm:$0xf] %v899
      %916 = vst [vmem:[%s439 + $0x10] sm:$0xf] %v900
      %917 = vst [vmem:[%s439 + $0x14] sm:$0xf] %v901
      %918 = vst [vmem:[%s439 + $0x18] sm:$0xf] %v902
      %919 = vst [vmem:[%s439 + $0x1c] sm:$0xf] %v903
      %s920 = smul.u32 8, %s24
      %p921 = scmp.lt.s32.totalorder %s920, 15
      %s922 = scalar_select %p921, %s920, 15
      %p923 = scmp.lt.s32.totalorder %s25, 0
      %s924 = scalar_select %p923, %s25, 0
      %s925 = sadd.s32 %s924, %s922
      %s926 = smul.addr %s925, 4
      %s927 = scalar_lea.vmem %s7, %s926
      %s928 = smul.u32 8, %s24
      %p929 = scmp.lt.s32.totalorder %s928, 15
      %s930 = scalar_select %p929, %s928, 15
      %p931 = scmp.lt.s32.totalorder %s25, 0
      %s932 = scalar_select %p931, %s25, 0
      %s933 = sadd.s32 %s932, %s930
      %s934 = smul.addr %s933, 4
      %s935 = scalar_lea.vmem %s8, %s934
      // Predicated region
      $region49: #{basic_block_forward.2} parent=47 // pred_check
        %p936 = pneg %p234
      $region50: #{basic_block_forward.2} parent=47 // pred_check_branch
        %938 = sbr.rel (%p936) target = $region52
      $region51: #{basic_block_forward.2} parent=47 // pred_region
        %s939 = smul.u32 8, %s24
      $region52: #{basic_block_forward.2} parent=47 // pred_fallthru
        _
      // Predicated region
      $region53: #{basic_block_forward.2} parent=47 // pred_check
        %p940 = pneg %p262
      $region54: #{basic_block_forward.2} parent=47 // pred_check_branch
        %942 = sbr.rel (%p940) target = $region56
      $region55: #{basic_block_forward.2} parent=47 // pred_region
        %s943 = smul.u32 8, %s24
      $region56: #{basic_block_forward.2} parent=47 // pred_fallthru
        _
    $region48: #{basic_block_forward.2} parent=5 // pred_fallthru
      _
    %p944 = scmp.le.s32.totalorder 2, %s15
    // Predicated region
    $region57: #{basic_block_forward.2} parent=5 // pred_check
      %p945 = pneg %p944
    $region58: #{basic_block_forward.2} parent=5 // pred_check_branch
      %947 = sbr.rel (%p945) target = $region60
    $region59: #{basic_block_forward.2} parent=5 // pred_region
      %s948 = ssub.s32 %s15, 2
      // Predicated region
      $region61: #{basic_block_forward.2} parent=59 // pred_check
        %p949 = pneg %p240
      $region62: #{basic_block_forward.2} parent=59 // pred_check_branch
        %951 = sbr.rel (%p949) target = $region64
      $region63: #{basic_block_forward.2} parent=59 // pred_region
        %s952 = smul.u32 8, %s26
        %p953 = scmp.lt.s32.totalorder %s952, 15
        %s954 = scalar_select %p953, %s952, 15
        %p955 = scmp.lt.s32.totalorder %s27, 0
        %s956 = scalar_select %p955, %s27, 0
        %s957 = sadd.s32 %s956, %s954
        %s958 = smul.addr %s957, 4
        %s959 = scalar_lea.vmem %s7, %s958
      $region64: #{basic_block_forward.2} parent=59 // pred_fallthru
        _
      // Predicated region
      $region65: #{basic_block_forward.2} parent=59 // pred_check
        %p960 = pneg %p268
      $region66: #{basic_block_forward.2} parent=59 // pred_check_branch
        %962 = sbr.rel (%p960) target = $region68
      $region67: #{basic_block_forward.2} parent=59 // pred_region
        %s963 = smul.u32 8, %s26
        %p964 = scmp.lt.s32.totalorder %s963, 15
        %s965 = scalar_select %p964, %s963, 15
        %p966 = scmp.lt.s32.totalorder %s27, 0
        %s967 = scalar_select %p966, %s27, 0
        %s968 = sadd.s32 %s967, %s965
        %s969 = smul.addr %s968, 4
        %s970 = scalar_lea.vmem %s8, %s969
      $region68: #{basic_block_forward.2} parent=59 // pred_fallthru
        _
    $region60: #{basic_block_forward.2} parent=5 // pred_fallthru
      _
  $region6: #{basic_block_forward.2} parent=0 // loop_footer
    %s19 = sadd.s32 1, %s15
  $region7: #{basic_block_forward.2} parent=0 // loop_footer_branch
    %14 = sbr.rel target = $region3
  $region8: #{basic_block_forward.2} parent=0 // loop_exit
    _

// kernel: basic_block_forward.3
$region0: #{basic_block_forward.3}
  #allocation0 [shape = 'u32[]', space=smem, size = 0x4, offset = 0x4, fixed_abs, tag = 'smem constant byte address 0x4 - core index']
  #allocation1 [shape = 'u32[144,128]{1,0:T(1,128)}', space=vmem, size = 0x12000, scoped, tag = 'internal scratch']
  %s0 = inlined_call_operand.vmem [shape: bf16[128,128], index: 0, kind: input, shape index: {}]
  %s1 = inlined_call_operand.vmem [shape: bf16[128,128], index: 1, kind: input, shape index: {}]
  %s2 = inlined_call_operand.vmem [shape: f32[1,128], index: 2, kind: input, shape index: {}]
  %s3 = inlined_call_operand.vmem [shape: f32[1,128], index: 3, kind: input, shape index: {}]
  %s4 = inlined_call_operand.vmem [shape: bf16[128,128], index: 4, kind: input, shape index: {}]
  %s5 = inlined_call_operand.vmem [shape: bf16[128,128], index: 5, kind: output, shape index: {}]
  %s6 = sld [smem:[#allocation0]]
  $region53: #{basic_block_forward.3} parent=0
    _
  %s8 = ssub.s32 1, %s6
  %s9 = scalar_select 0, %s8, %s6
  loop: start=0, step=1, limit=4
  $region2: #{basic_block_forward.3} parent=0 // loop_pre_header
    _
  $region3: #{basic_block_forward.3} parent=0 // loop_header
    %s11 = sphi 0, %s15
    %p12 = scmp.ge.s32.totalorder %s11, 4
    %s18 = sphi 0, %s30
    %s19 = sphi 0, %s26
    %s20 = sphi 0, %s18
    %s21 = sphi 0, %s19
    %s22 = sphi 0, %s20
    %s23 = sphi 0, %s21
    %s33 = sphi 0, %s35
    %s36 = sphi 0, %s33
    %s37 = sphi 0, %s36
    %s53 = sphi 0, %s37
    %s59 = sphi 0, %s61
    %s62 = sphi 0, %s59
    %s63 = sphi 0, %s62
    %s79 = sphi 0, %s63
    %s85 = sphi 0, %s87
    %s88 = sphi 0, %s85
    %s89 = sphi 0, %s88
    %s105 = sphi 0, %s89
    %s111 = sphi 0, %s113
    %s114 = sphi 0, %s111
    %s115 = sphi 0, %s114
    %s131 = sphi 0, %s115
    %s139 = sphi 0, %s141
    %s142 = sphi 0, %s139
    %s143 = sphi 0, %s142
    %s159 = sphi 0, %s143
    %s167 = sphi 0, %s169
    %s170 = sphi 0, %s167
    %s171 = sphi 0, %s170
    %s187 = sphi 0, %s171
  $region4: #{basic_block_forward.3} parent=0 // loop_header_branch
    %14 = sbr.rel (%p12) target = $region8
  $region5: #{basic_block_forward.3} parent=0 // loop_body
    %s16 = ssub.s32 %s11, 1
    %s17 = ssub.s32 %s11, 2
    %s24 = sadd.s32 1, %s19
    %p25 = scmp.ge.s32.totalorder %s24, 1
    %s26 = scalar_select %p25, 0, %s24
    %s27 = sadd.s32 1, %s18
    %s28 = scalar_select %p25, %s27, %s18
    %p29 = scmp.ge.s32.totalorder %s28, 2
    %s30 = scalar_select %p29, 0, %s28
    %s31 = ssub.s32 %s18, %s30
    %p32 = scmp.eq.s32.totalorder %s31, 0
    %s34 = sadd.s32 %s33, 1
    %s35 = scalar_select %p32, %s33, %s34
    %p38 = pneg %p32
    %p39 = scmp.eq.s32.totalorder %s11, 1
    %p40 = por %p38, %p39
    %p41 = scmp.ne.s32.totalorder %s33, %s36
    %p42 = scmp.eq.s32.totalorder %s11, 0
    %p43 = por %p41, %p42
    %p44 = scmp.ne.s32.totalorder %s33, %s36
    %p45 = scmp.eq.s32.totalorder %s16, 1
    %p46 = por %p44, %p45
    %p47 = scmp.ne.s32.totalorder %s36, %s37
    %p48 = scmp.eq.s32.totalorder %s16, 0
    %p49 = por %p47, %p48
    %p50 = scmp.ne.s32.totalorder %s36, %s37
    %p51 = scmp.eq.s32.totalorder %s17, 1
    %p52 = por %p50, %p51
    %p54 = scmp.ne.s32.totalorder %s37, %s53
    %p55 = scmp.eq.s32.totalorder %s17, 0
    %p56 = por %p54, %p55
    %s57 = ssub.s32 %s19, %s26
    %p58 = scmp.eq.s32.totalorder %s57, 0
    %s60 = sadd.s32 %s59, 1
    %s61 = scalar_select %p58, %s59, %s60
    %p64 = pneg %p58
    %p65 = scmp.eq.s32.totalorder %s11, 1
    %p66 = por %p64, %p65
    %p67 = scmp.ne.s32.totalorder %s59, %s62
    %p68 = scmp.eq.s32.totalorder %s11, 0
    %p69 = por %p67, %p68
    %p70 = scmp.ne.s32.totalorder %s59, %s62
    %p71 = scmp.eq.s32.totalorder %s16, 1
    %p72 = por %p70, %p71
    %p73 = scmp.ne.s32.totalorder %s62, %s63
    %p74 = scmp.eq.s32.totalorder %s16, 0
    %p75 = por %p73, %p74
    %p76 = scmp.ne.s32.totalorder %s62, %s63
    %p77 = scmp.eq.s32.totalorder %s17, 1
    %p78 = por %p76, %p77
    %p80 = scmp.ne.s32.totalorder %s63, %s79
    %p81 = scmp.eq.s32.totalorder %s17, 0
    %p82 = por %p80, %p81
    %s83 = ssub.s32 %s19, %s26
    %p84 = scmp.eq.s32.totalorder %s83, 0
    %s86 = sadd.s32 %s85, 1
    %s87 = scalar_select %p84, %s85, %s86
    %p90 = pneg %p84
    %p91 = scmp.eq.s32.totalorder %s11, 1
    %p92 = por %p90, %p91
    %p93 = scmp.ne.s32.totalorder %s85, %s88
    %p94 = scmp.eq.s32.totalorder %s11, 0
    %p95 = por %p93, %p94
    %p96 = scmp.ne.s32.totalorder %s85, %s88
    %p97 = scmp.eq.s32.totalorder %s16, 1
    %p98 = por %p96, %p97
    %p99 = scmp.ne.s32.totalorder %s88, %s89
    %p100 = scmp.eq.s32.totalorder %s16, 0
    %p101 = por %p99, %p100
    %p102 = scmp.ne.s32.totalorder %s88, %s89
    %p103 = scmp.eq.s32.totalorder %s17, 1
    %p104 = por %p102, %p103
    %p106 = scmp.ne.s32.totalorder %s89, %s105
    %p107 = scmp.eq.s32.totalorder %s17, 0
    %p108 = por %p106, %p107
    %s109 = ssub.s32 %s19, %s26
    %p110 = scmp.eq.s32.totalorder %s109, 0
    %s112 = sadd.s32 %s111, 1
    %s113 = scalar_select %p110, %s111, %s112
    %p116 = pneg %p110
    %p117 = scmp.eq.s32.totalorder %s11, 1
    %p118 = por %p116, %p117
    %p119 = scmp.ne.s32.totalorder %s111, %s114
    %p120 = scmp.eq.s32.totalorder %s11, 0
    %p121 = por %p119, %p120
    %p122 = scmp.ne.s32.totalorder %s111, %s114
    %p123 = scmp.eq.s32.totalorder %s16, 1
    %p124 = por %p122, %p123
    %p125 = scmp.ne.s32.totalorder %s114, %s115
    %p126 = scmp.eq.s32.totalorder %s16, 0
    %p127 = por %p125, %p126
    %p128 = scmp.ne.s32.totalorder %s114, %s115
    %p129 = scmp.eq.s32.totalorder %s17, 1
    %p130 = por %p128, %p129
    %p132 = scmp.ne.s32.totalorder %s115, %s131
    %p133 = scmp.eq.s32.totalorder %s17, 0
    %p134 = por %p132, %p133
    %s135 = ssub.s32 %s18, %s30
    %s136 = ssub.s32 %s19, %s26
    %s137 = sor.u32 %s135, %s136
    %p138 = scmp.eq.s32.totalorder %s137, 0
    %s140 = sadd.s32 %s139, 1
    %s141 = scalar_select %p138, %s139, %s140
    %p144 = pneg %p138
    %p145 = scmp.eq.s32.totalorder %s11, 1
    %p146 = por %p144, %p145
    %p147 = scmp.ne.s32.totalorder %s139, %s142
    %p148 = scmp.eq.s32.totalorder %s11, 0
    %p149 = por %p147, %p148
    %p150 = scmp.ne.s32.totalorder %s139, %s142
    %p151 = scmp.eq.s32.totalorder %s16, 1
    %p152 = por %p150, %p151
    %p153 = scmp.ne.s32.totalorder %s142, %s143
    %p154 = scmp.eq.s32.totalorder %s16, 0
    %p155 = por %p153, %p154
    %p156 = scmp.ne.s32.totalorder %s142, %s143
    %p157 = scmp.eq.s32.totalorder %s17, 1
    %p158 = por %p156, %p157
    %p160 = scmp.ne.s32.totalorder %s143, %s159
    %p161 = scmp.eq.s32.totalorder %s17, 0
    %p162 = por %p160, %p161
    %s163 = ssub.s32 %s18, %s30
    %s164 = ssub.s32 %s19, %s26
    %s165 = sor.u32 %s163, %s164
    %p166 = scmp.eq.s32.totalorder %s165, 0
    %s168 = sadd.s32 %s167, 1
    %s169 = scalar_select %p166, %s167, %s168
    %p172 = pneg %p166
    %p173 = scmp.eq.s32.totalorder %s11, 1
    %p174 = por %p172, %p173
    %p175 = scmp.ne.s32.totalorder %s167, %s170
    %p176 = scmp.eq.s32.totalorder %s11, 0
    %p177 = por %p175, %p176
    %p178 = scmp.ne.s32.totalorder %s167, %s170
    %p179 = scmp.eq.s32.totalorder %s16, 1
    %p180 = por %p178, %p179
    %p181 = scmp.ne.s32.totalorder %s170, %s171
    %p182 = scmp.eq.s32.totalorder %s16, 0
    %p183 = por %p181, %p182
    %p184 = scmp.ne.s32.totalorder %s170, %s171
    %p185 = scmp.eq.s32.totalorder %s17, 1
    %p186 = por %p184, %p185
    %p188 = scmp.ne.s32.totalorder %s171, %s187
    %p189 = scmp.eq.s32.totalorder %s17, 0
    %p190 = por %p188, %p189
    %p191 = scmp.le.s32.totalorder 1, %s11
    %p192 = scmp.lt.s32.totalorder %s11, 3
    %p193 = pnand %p191, %p192
    %p194 = pneg %p193
    // Predicated region
    $region9: #{basic_block_forward.3} parent=5 // pred_check
      _
    $region10: #{basic_block_forward.3} parent=5 // pred_check_branch
      %196 = sbr.rel (%p193) target = $region12
    $region11: #{basic_block_forward.3} parent=5 // pred_region
      %s197 = ssub.s32 %s11, 1
      // Predicated region
      $region13: #{basic_block_forward.3} parent=11 // pred_check
        %p198 = pneg %p75
      $region14: #{basic_block_forward.3} parent=11 // pred_check_branch
        %200 = sbr.rel (%p198) target = $region16
      $region15: #{basic_block_forward.3} parent=11 // pred_region
        %p201 = scmp.lt.s32.totalorder %s21, 0
        %s202 = scalar_select %p201, %s21, 0
        %s203 = smul.addr %s202, 4
        %s204 = scalar_lea.vmem %s1, %s203
      $region16: #{basic_block_forward.3} parent=11 // pred_fallthru
        _
      // Predicated region
      $region17: #{basic_block_forward.3} parent=11 // pred_check
        %p205 = pneg %p101
      $region18: #{basic_block_forward.3} parent=11 // pred_check_branch
        %207 = sbr.rel (%p205) target = $region20
      $region19: #{basic_block_forward.3} parent=11 // pred_region
        %p208 = scmp.lt.s32.totalorder %s21, 0
        %s209 = scalar_select %p208, %s21, 0
        %s210 = scalar_lea.vmem %s2, %s209
      $region20: #{basic_block_forward.3} parent=11 // pred_fallthru
        _
      // Predicated region
      $region21: #{basic_block_forward.3} parent=11 // pred_check
        %p211 = pneg %p127
      $region22: #{basic_block_forward.3} parent=11 // pred_check_branch
        %213 = sbr.rel (%p211) target = $region24
      $region23: #{basic_block_forward.3} parent=11 // pred_region
        %p214 = scmp.lt.s32.totalorder %s21, 0
        %s215 = scalar_select %p214, %s21, 0
        %s216 = scalar_lea.vmem %s3, %s215
      $region24: #{basic_block_forward.3} parent=11 // pred_fallthru
        _
    $region12: #{basic_block_forward.3} parent=5 // pred_fallthru
      _
    %p217 = scmp.lt.s32.totalorder %s11, 2
    // Predicated region
    $region25: #{basic_block_forward.3} parent=5 // pred_check
      %p218 = pneg %p217
    $region26: #{basic_block_forward.3} parent=5 // pred_check_branch
      %220 = sbr.rel (%p218) target = $region28
    $region27: #{basic_block_forward.3} parent=5 // pred_region
      // Predicated region
      $region29: #{basic_block_forward.3} parent=27 // pred_check
        %p221 = pneg %p43
      $region30: #{basic_block_forward.3} parent=27 // pred_check_branch
        %223 = sbr.rel (%p221) target = $region32
      $region31: #{basic_block_forward.3} parent=27 // pred_region
        %s224 = smul.u32 8, %s18
        %p225 = scmp.lt.s32.totalorder %s224, 15
        %s226 = scalar_select %p225, %s224, 15
        %s227 = smul.addr %s226, 4
        %s228 = scalar_lea.vmem %s0, %s227
        %s229 = smul.u32 8, %s18
      $region32: #{basic_block_forward.3} parent=27 // pred_fallthru
        _
      // Predicated region
      $region33: #{basic_block_forward.3} parent=27 // pred_check
        %p230 = pneg %p149
      $region34: #{basic_block_forward.3} parent=27 // pred_check_branch
        %232 = sbr.rel (%p230) target = $region36
      $region35: #{basic_block_forward.3} parent=27 // pred_region
        %s233 = smul.u32 8, %s18
        %p234 = scmp.lt.s32.totalorder %s233, 15
        %s235 = scalar_select %p234, %s233, 15
        %p236 = scmp.lt.s32.totalorder %s19, 0
        %s237 = scalar_select %p236, %s19, 0
        %s238 = sadd.s32 %s237, %s235
        %s239 = smul.addr %s238, 4
        %s240 = scalar_lea.vmem %s4, %s239
        %s241 = smul.u32 8, %s18
      $region36: #{basic_block_forward.3} parent=27 // pred_fallthru
        _
    $region28: #{basic_block_forward.3} parent=5 // pred_fallthru
      _
    %p242 = scmp.le.s32.totalorder 1, %s11
    %p243 = scmp.lt.s32.totalorder %s11, 3
    %p244 = pnand %p242, %p243
    %p245 = pneg %p244
    // Predicated region
    $region37: #{basic_block_forward.3} parent=5 // pred_check
      _
    $region38: #{basic_block_forward.3} parent=5 // pred_check_branch
      %247 = sbr.rel (%p244) target = $region40
    $region39: #{basic_block_forward.3} parent=5 // pred_region
      %s248 = ssub.s32 %s11, 1
      %s249 = smul.u32 8, %s20
      %p250 = scmp.lt.s32.totalorder %s249, 15
      %s251 = scalar_select %p250, %s249, 15
      %s252 = smul.addr %s251, 4
      %s253 = scalar_lea.vmem %s0, %s252
      %p254 = pneg %p49
      %p255 = pneg %p46
      %p256 = scmp.lt.s32.totalorder %s21, 0
      %s257 = scalar_select %p256, %s21, 0
      %s258 = smul.addr %s257, 4
      %s259 = scalar_lea.vmem %s1, %s258
      %p260 = pneg %p75
      %p261 = pneg %p72
      %p262 = scmp.lt.s32.totalorder %s21, 0
      %s263 = scalar_select %p262, %s21, 0
      %s264 = scalar_lea.vmem %s2, %s263
      %p265 = pneg %p101
      %p266 = pneg %p98
      %p267 = scmp.lt.s32.totalorder %s21, 0
      %s268 = scalar_select %p267, %s21, 0
      %s269 = scalar_lea.vmem %s3, %s268
      %p270 = pneg %p127
      %p271 = pneg %p124
      %s272 = smul.u32 8, %s20
      %p273 = scmp.lt.s32.totalorder %s272, 15
      %s274 = scalar_select %p273, %s272, 15
      %p275 = scmp.lt.s32.totalorder %s21, 0
      %s276 = scalar_select %p275, %s21, 0
      %s277 = sadd.s32 %s276, %s274
      %s278 = smul.addr %s277, 4
      %s279 = scalar_lea.vmem %s4, %s278
      %p280 = pneg %p155
      %p281 = pneg %p152
      %p282 = pneg %p183
      %p283 = pneg %p180
      %s284 = smul.u32 8, %s20
      %p285 = scmp.lt.s32.totalorder %s284, 15
      %s286 = scalar_select %p285, %s284, 15
      %p287 = scmp.lt.s32.totalorder %s21, 0
      %s288 = scalar_select %p287, %s21, 0
      %s289 = sadd.s32 %s288, %s286
      %s290 = smul.addr %s289, 4
      %s291 = scalar_lea.vmem %s5, %s290
      %s292 = smul.u32 8, %s20
      %p293 = scmp.lt.s32.totalorder %s292, 15
      %s294 = scalar_select %p293, %s292, 15
      %s295 = smul.addr %s294, 4
      %s296 = scalar_lea.vmem %s0, %s295
      %s297 = smul.u32 8, %s20
      %p298 = scmp.lt.s32.totalorder %s21, 0
      %s299 = scalar_select %p298, %s21, 0
      %s300 = smul.addr %s299, 4
      %s301 = scalar_lea.vmem %s1, %s300
      %p302 = scmp.lt.s32.totalorder %s21, 0
      %s303 = scalar_select %p302, %s21, 0
      %s304 = scalar_lea.vmem %s2, %s303
      %p305 = scmp.lt.s32.totalorder %s21, 0
      %s306 = scalar_select %p305, %s21, 0
      %s307 = scalar_lea.vmem %s3, %s306
      %s308 = smul.u32 8, %s20
      %p309 = scmp.lt.s32.totalorder %s308, 15
      %s310 = scalar_select %p309, %s308, 15
      %p311 = scmp.lt.s32.totalorder %s21, 0
      %s312 = scalar_select %p311, %s21, 0
      %s313 = sadd.s32 %s312, %s310
      %s314 = smul.addr %s313, 4
      %s315 = scalar_lea.vmem %s4, %s314
      %s316 = smul.u32 8, %s20
      %s317 = smul.u32 8, %s20
      %p318 = scmp.lt.s32.totalorder %s317, 15
      %s319 = scalar_select %p318, %s317, 15
      %p320 = scmp.lt.s32.totalorder %s21, 0
      %s321 = scalar_select %p320, %s21, 0
      %s322 = sadd.s32 %s321, %s319
      %s323 = smul.addr %s322, 4
      %s324 = scalar_lea.vmem %s5, %s323
      %s325 = smul.u32 8, %s20
      %v327 = vld [vmem:[%s296] sm:$0xf]
      %v328 = vld [vmem:[%s296 + $0x4] sm:$0xf]
      %v329 = vld [vmem:[%s296 + $0x8] sm:$0xf]
      %v330 = vld [vmem:[%s296 + $0xc] sm:$0xf]
      %v331 = vld [vmem:[%s296 + $0x10] sm:$0xf]
      %v332 = vld [vmem:[%s296 + $0x14] sm:$0xf]
      %v333 = vld [vmem:[%s296 + $0x18] sm:$0xf]
      %v334 = vld [vmem:[%s296 + $0x1c] sm:$0xf]
      %v335 = vld [vmem:[%s301] sm:$0xf]
      %v336 = vld [vmem:[%s301 + $0x4] sm:$0xf]
      %v337 = vld [vmem:[%s301 + $0x8] sm:$0xf]
      %v338 = vld [vmem:[%s301 + $0xc] sm:$0xf]
      %v339 = vld [vmem:[%s301 + $0x10] sm:$0xf]
      %v340 = vld [vmem:[%s301 + $0x14] sm:$0xf]
      %v341 = vld [vmem:[%s301 + $0x18] sm:$0xf]
      %v342 = vld [vmem:[%s301 + $0x1c] sm:$0xf]
      %v343 = vld [vmem:[%s301 + $0x20] sm:$0xf]
      %v344 = vld [vmem:[%s301 + $0x24] sm:$0xf]
      %v345 = vld [vmem:[%s301 + $0x28] sm:$0xf]
      %v346 = vld [vmem:[%s301 + $0x2c] sm:$0xf]
      %v347 = vld [vmem:[%s301 + $0x30] sm:$0xf]
      %v348 = vld [vmem:[%s301 + $0x34] sm:$0xf]
      %v349 = vld [vmem:[%s301 + $0x38] sm:$0xf]
      %v350 = vld [vmem:[%s301 + $0x3c] sm:$0xf]
      %v359 = vunpack.c.l.b16 %v327
      %v360 = vunpack.c.l.b16 %v328
      %v361 = vunpack.c.l.b16 %v329
      %v362 = vunpack.c.l.b16 %v330
      %v363 = vunpack.c.l.b16 %v331
      %v364 = vunpack.c.l.b16 %v332
      %v365 = vunpack.c.l.b16 %v333
      %v366 = vunpack.c.l.b16 %v334
      %v367 = vpack.c.b16 %v360, %v359
      %v368 = vpack.c.b16 %v362, %v361
      %v369 = vpack.c.b16 %v364, %v363
      %v370 = vpack.c.b16 %v366, %v365
      %v391 = vunpack.c.l.b16 %v335
      %v392 = vunpack.c.l.b16 %v336
      %v393 = vunpack.c.l.b16 %v337
      %v394 = vunpack.c.l.b16 %v338
      %v395 = vunpack.c.l.b16 %v339
      %v396 = vunpack.c.l.b16 %v340
      %v397 = vunpack.c.l.b16 %v341
      %v398 = vunpack.c.l.b16 %v342
      %v399 = vunpack.c.l.b16 %v343
      %v400 = vunpack.c.l.b16 %v344
      %v401 = vunpack.c.l.b16 %v345
      %v402 = vunpack.c.l.b16 %v346
      %v403 = vunpack.c.l.b16 %v347
      %v404 = vunpack.c.l.b16 %v348
      %v405 = vunpack.c.l.b16 %v349
      %v406 = vunpack.c.l.b16 %v350
      %v407 = vpack.c.b16 %v392, %v391
      %v408 = vpack.c.b16 %v394, %v393
      %v409 = vpack.c.b16 %v396, %v395
      %v410 = vpack.c.b16 %v398, %v397
      %v411 = vpack.c.b16 %v400, %v399
      %v412 = vpack.c.b16 %v402, %v401
      %v413 = vpack.c.b16 %v404, %v403
      %v414 = vpack.c.b16 %v406, %v405
      %423 = vmatprep.subr.bf16.mxu0 0
      %424 = vmatpush1.bf16.msra.mxu0 %v407
      %425 = vmatprep.subr.bf16.mxu0 0
      %426 = vmatpush1.bf16.msra.mxu0 %v408
      %427 = vmatprep.subr.bf16.mxu0 0
      %428 = vmatpush1.bf16.msra.mxu0 %v409
      %429 = vmatprep.subr.bf16.mxu0 0
      %430 = vmatpush1.bf16.msra.mxu0 %v410
      %431 = vmatprep.subr.bf16.mxu0 0
      %432 = vmatpush1.bf16.msra.mxu0 %v411
      %433 = vmatprep.subr.bf16.mxu0 0
      %434 = vmatpush1.bf16.msra.mxu0 %v412
      %435 = vmatprep.subr.bf16.mxu0 0
      %436 = vmatpush1.bf16.msra.mxu0 %v413
      %437 = vmatprep.subr.bf16.mxu0 0
      %438 = vmatpush1.bf16.msra.mxu0 %v414
      %439 = vmatprep.subr.bf16.mxu0 0
      %440 = vmatpush1.bf16.msra.mxu0 0
      %441 = vmatprep.subr.bf16.mxu0 0
      %442 = vmatpush1.bf16.msra.mxu0 0
      %443 = vmatprep.subr.bf16.mxu0 0
      %444 = vmatpush1.bf16.msra.mxu0 0
      %445 = vmatprep.subr.bf16.mxu0 0
      %446 = vmatpush1.bf16.msra.mxu0 0
      %447 = vmatprep.subr.bf16.mxu0 0
      %448 = vmatpush1.bf16.msra.mxu0 0
      %449 = vmatprep.subr.bf16.mxu0 0
      %450 = vmatpush1.bf16.msra.mxu0 0
      %451 = vmatprep.subr.bf16.mxu0 0
      %452 = vmatpush1.bf16.msra.mxu0 0
      %453 = vmatprep.subr.bf16.mxu0 0
      %454 = vmatpush1.bf16.msra.mxu0 0
      %455 = vmatprep.mubr.bf16.mxu0 0
      %456 = vmatmul.mubr.bf16.gmra.mrb[0].mxu0 %v367
      %v457 = vpop.f32.mrb[0].mxu0
      %v458 = vadd.f32 0.0, %v457
      %v459 = vpop.f32.mrb[0].mxu0
      %v460 = vpop.f32.mrb[0].mxu0
      %v461 = vadd.f32 0.0, %v460
      %v462 = vpop.f32.mrb[0].mxu0
      %463 = vmatprep.mubr.bf16.mxu0 0
      %464 = vmatmul.mubr.bf16.gmra.mrb[0].mxu0 %v368
      %v465 = vpop.f32.mrb[0].mxu0
      %v466 = vadd.f32 0.0, %v465
      %v467 = vpop.f32.mrb[0].mxu0
      %v468 = vpop.f32.mrb[0].mxu0
      %v469 = vadd.f32 0.0, %v468
      %v470 = vpop.f32.mrb[0].mxu0
      %471 = vmatprep.mubr.bf16.mxu0 0
      %472 = vmatmul.mubr.bf16.gmra.mrb[0].mxu0 %v369
      %v473 = vpop.f32.mrb[0].mxu0
      %v474 = vadd.f32 0.0, %v473
      %v475 = vpop.f32.mrb[0].mxu0
      %v476 = vpop.f32.mrb[0].mxu0
      %v477 = vadd.f32 0.0, %v476
      %v478 = vpop.f32.mrb[0].mxu0
      %479 = vmatprep.mubr.bf16.mxu0 0
      %480 = vmatmul.mubr.bf16.gmra.mrb[0].mxu0 %v370
      %v481 = vpop.f32.mrb[0].mxu0
      %v482 = vadd.f32 0.0, %v481
      %v483 = vpop.f32.mrb[0].mxu0
      %v484 = vpop.f32.mrb[0].mxu0
      %v485 = vadd.f32 0.0, %v484
      %v486 = vpop.f32.mrb[0].mxu0
      %487 = vdwg.mxu0
      %v488 = vld [vmem:[%s304] sm:$0x1]
      %v490 = vlaneseq
      %v491 = vshrl.u32 %v490, 7
      %v492 = vsub.s32 0, %v491
      %v493 = vrot.slane %v488, %v492
      %v495 = vmul.f32 %v458, %v493
      %v496 = vmul.f32 %v461, %v493
      %v497 = vmul.f32 %v466, %v493
      %v498 = vmul.f32 %v469, %v493
      %v499 = vmul.f32 %v474, %v493
      %v500 = vmul.f32 %v477, %v493
      %v501 = vmul.f32 %v482, %v493
      %v502 = vmul.f32 %v485, %v493
      %v503 = vld [vmem:[%s307] sm:$0x1]
      %v505 = vlaneseq
      %v506 = vshrl.u32 %v505, 7
      %v507 = vsub.s32 0, %v506
      %v508 = vrot.slane %v503, %v507
      %v510 = vadd.f32 %v495, %v508
      %v511 = vadd.f32 %v496, %v508
      %v512 = vadd.f32 %v497, %v508
      %v513 = vadd.f32 %v498, %v508
      %v514 = vadd.f32 %v499, %v508
      %v515 = vadd.f32 %v500, %v508
      %v516 = vadd.f32 %v501, %v508
      %v517 = vadd.f32 %v502, %v508
      %v518 = vld [vmem:[%s315] sm:$0xf]
      %v519 = vld [vmem:[%s315 + $0x4] sm:$0xf]
      %v520 = vld [vmem:[%s315 + $0x8] sm:$0xf]
      %v521 = vld [vmem:[%s315 + $0xc] sm:$0xf]
      %v522 = vld [vmem:[%s315 + $0x10] sm:$0xf]
      %v523 = vld [vmem:[%s315 + $0x14] sm:$0xf]
      %v524 = vld [vmem:[%s315 + $0x18] sm:$0xf]
      %v525 = vld [vmem:[%s315 + $0x1c] sm:$0xf]
      %v526 = vunpack.c.l.bf16 %v518
      %v527 = vunpack.c.l.bf16 %v519
      %v528 = vunpack.c.l.bf16 %v520
      %v529 = vunpack.c.l.bf16 %v521
      %v530 = vunpack.c.l.bf16 %v522
      %v531 = vunpack.c.l.bf16 %v523
      %v532 = vunpack.c.l.bf16 %v524
      %v533 = vunpack.c.l.bf16 %v525
      %v534 = vadd.f32 %v510, %v526
      %v535 = vadd.f32 %v511, %v527
      %v536 = vadd.f32 %v512, %v528
      %v537 = vadd.f32 %v513, %v529
      %v538 = vadd.f32 %v514, %v530
      %v539 = vadd.f32 %v515, %v531
      %v540 = vadd.f32 %v516, %v532
      %v541 = vadd.f32 %v517, %v533
      %vm542 = vcmp.gt.f32.partialorder %v534, 0.0
      %vm543 = vcmp.gt.f32.partialorder %v535, 0.0
      %vm544 = vcmp.gt.f32.partialorder %v536, 0.0
      %vm545 = vcmp.gt.f32.partialorder %v537, 0.0
      %vm546 = vcmp.gt.f32.partialorder %v538, 0.0
      %vm547 = vcmp.gt.f32.partialorder %v539, 0.0
      %vm548 = vcmp.gt.f32.partialorder %v540, 0.0
      %vm549 = vcmp.gt.f32.partialorder %v541, 0.0
      %v550 = vmin.f32 %v534, 0.0
      %v551 = vmin.f32 %v535, 0.0
      %v552 = vmin.f32 %v536, 0.0
      %v553 = vmin.f32 %v537, 0.0
      %v554 = vmin.f32 %v538, 0.0
      %v555 = vmin.f32 %v539, 0.0
      %v556 = vmin.f32 %v540, 0.0
      %v557 = vmin.f32 %v541, 0.0
      %v558 = vmul.f32 %v550, 1.442695
      %v559 = vpow.pop %v558
      %v560 = vmul.f32 %v551, 1.442695
      %v561 = vpow.pop %v560
      %v562 = vmul.f32 %v552, 1.442695
      %v563 = vpow.pop %v562
      %v564 = vmul.f32 %v553, 1.442695
      %v565 = vpow.pop %v564
      %v566 = vmul.f32 %v554, 1.442695
      %v567 = vpow.pop %v566
      %v568 = vmul.f32 %v555, 1.442695
      %v569 = vpow.pop %v568
      %v570 = vmul.f32 %v556, 1.442695
      %v571 = vpow.pop %v570
      %v572 = vmul.f32 %v557, 1.442695
      %v573 = vpow.pop %v572
      %v574 = vsub.f32 %v559, 1.0
      %v575 = vsub.f32 %v561, 1.0
      %v576 = vsub.f32 %v563, 1.0
      %v577 = vsub.f32 %v565, 1.0
      %v578 = vsub.f32 %v567, 1.0
      %v579 = vsub.f32 %v569, 1.0
      %v580 = vsub.f32 %v571, 1.0
      %v581 = vsub.f32 %v573, 1.0
      %v582 = vsel %vm542, %v534, %v574
      %v583 = vsel %vm543, %v535, %v575
      %v584 = vsel %vm544, %v536, %v576
      %v585 = vsel %vm545, %v537, %v577
      %v586 = vsel %vm546, %v538, %v578
      %v587 = vsel %vm547, %v539, %v579
      %v588 = vsel %vm548, %v540, %v580
      %v589 = vsel %vm549, %v541, %v581
      %v590 = vpack.c.bf16 %v583, %v582
      %v591 = vpack.c.bf16 %v585, %v584
      %v592 = vpack.c.bf16 %v587, %v586
      %v593 = vpack.c.bf16 %v589, %v588
      %v598 = vunpack.c.l.b16 %v590
      %v599 = vunpack.c.h.b16 %v590
      %v600 = vunpack.c.l.b16 %v591
      %v601 = vunpack.c.h.b16 %v591
      %v602 = vunpack.c.l.b16 %v592
      %v603 = vunpack.c.h.b16 %v592
      %v604 = vunpack.c.l.b16 %v593
      %v605 = vunpack.c.h.b16 %v593
      %v606 = vpack.c.b16 %v598, %v598
      %v607 = vpack.c.b16 %v599, %v599
      %v608 = vpack.c.b16 %v600, %v600
      %v609 = vpack.c.b16 %v601, %v601
      %v610 = vpack.c.b16 %v602, %v602
      %v611 = vpack.c.b16 %v603, %v603
      %v612 = vpack.c.b16 %v604, %v604
      %v613 = vpack.c.b16 %v605, %v605
      %622 = vst [vmem:[%s324] sm:$0xf] %v606
      %623 = vst [vmem:[%s324 + $0x4] sm:$0xf] %v607
      %624 = vst [vmem:[%s324 + $0x8] sm:$0xf] %v608
      %625 = vst [vmem:[%s324 + $0xc] sm:$0xf] %v609
      %626 = vst [vmem:[%s324 + $0x10] sm:$0xf] %v610
      %627 = vst [vmem:[%s324 + $0x14] sm:$0xf] %v611
      %628 = vst [vmem:[%s324 + $0x18] sm:$0xf] %v612
      %629 = vst [vmem:[%s324 + $0x1c] sm:$0xf] %v613
      %s630 = smul.u32 8, %s20
      %p631 = scmp.lt.s32.totalorder %s630, 15
      %s632 = scalar_select %p631, %s630, 15
      %p633 = scmp.lt.s32.totalorder %s21, 0
      %s634 = scalar_select %p633, %s21, 0
      %s635 = sadd.s32 %s634, %s632
      %s636 = smul.addr %s635, 4
      %s637 = scalar_lea.vmem %s5, %s636
      // Predicated region
      $region41: #{basic_block_forward.3} parent=39 // pred_check
        %p638 = pneg %p180
      $region42: #{basic_block_forward.3} parent=39 // pred_check_branch
        %640 = sbr.rel (%p638) target = $region44
      $region43: #{basic_block_forward.3} parent=39 // pred_region
        %s641 = smul.u32 8, %s20
      $region44: #{basic_block_forward.3} parent=39 // pred_fallthru
        _
    $region40: #{basic_block_forward.3} parent=5 // pred_fallthru
      _
    %p642 = scmp.le.s32.totalorder 2, %s11
    // Predicated region
    $region45: #{basic_block_forward.3} parent=5 // pred_check
      %p643 = pneg %p642
    $region46: #{basic_block_forward.3} parent=5 // pred_check_branch
      %645 = sbr.rel (%p643) target = $region48
    $region47: #{basic_block_forward.3} parent=5 // pred_region
      %s646 = ssub.s32 %s11, 2
      // Predicated region
      $region49: #{basic_block_forward.3} parent=47 // pred_check
        %p647 = pneg %p186
      $region50: #{basic_block_forward.3} parent=47 // pred_check_branch
        %649 = sbr.rel (%p647) target = $region52
      $region51: #{basic_block_forward.3} parent=47 // pred_region
        %s650 = smul.u32 8, %s22
        %p651 = scmp.lt.s32.totalorder %s650, 15
        %s652 = scalar_select %p651, %s650, 15
        %p653 = scmp.lt.s32.totalorder %s23, 0
        %s654 = scalar_select %p653, %s23, 0
        %s655 = sadd.s32 %s654, %s652
        %s656 = smul.addr %s655, 4
        %s657 = scalar_lea.vmem %s5, %s656
      $region52: #{basic_block_forward.3} parent=47 // pred_fallthru
        _
    $region48: #{basic_block_forward.3} parent=5 // pred_fallthru
      _
  $region6: #{basic_block_forward.3} parent=0 // loop_footer
    %s15 = sadd.s32 1, %s11
  $region7: #{basic_block_forward.3} parent=0 // loop_footer_branch
    %10 = sbr.rel target = $region3
  $region8: #{basic_block_forward.3} parent=0 // loop_exit
    _

</llo_original>
